<compile_context>
chip_gen: v6e
topology: v6e:2x2x1
jax: 0.10.0
libtpu: 0.0.40
codegen_flags: <defaults>
</compile_context>

<pallas_src>
import jax
import jax.numpy as jnp
from jax import lax
from jax.experimental import pallas as pl
from jax.experimental.pallas import tpu as pltpu


def lstm_kernel(x_ref, w_ih_ref, w_hh_ref, b_ref, w_fc_ref, b_fc_ref, out_ref):
    # x_ref:    (T*B, H)  embedded inputs, time-major flat (row = t*B + b)
    # w_ih_ref: (H, 4H)   fused input->gate weights, gate order [i, f, g, o]
    # w_hh_ref: (H, 4H)   fused hidden->gate weights
    # b_ref:    (1, 4H)   combined bias (b_ih + b_hh)
    # w_fc_ref: (H, O)    final linear weight (transposed)
    # b_fc_ref: (1, O)    final linear bias
    # out_ref:  (B, T, O) batch-first softmax-over-time output
    B, T, O = out_ref.shape
    H = w_hh_ref.shape[0]

    # Hoisted, loop-invariant loads (avoid per-step vld / re-broadcast).
    w_hh = w_hh_ref[...]
    w_fc = w_fc_ref[...]
    b_fc = b_fc_ref[...]

    # Input-side projection for all timesteps in one MXU matmul: (T*B, 4H).
    xg = jnp.dot(x_ref[...], w_ih_ref[...],
                 preferred_element_type=jnp.float32) + b_ref[...]

    h = jnp.zeros((B, H), jnp.float32)
    c = jnp.zeros((B, H), jnp.float32)
    hs = []
    # TODO(synk): on v6e/v7x weights/activations could be cast to bf16 for the
    # matmuls (f32 accumulation); kept f32 here to match the f32 reference at
    # 1e-5 and to stay optimal on v5e (no bf16 VPU/EUP).
    for t in range(T):  # T is compile-time static -> fully unrolled
        gates = xg[t * B:(t + 1) * B, :] + jnp.dot(
            h, w_hh, preferred_element_type=jnp.float32)          # (B, 4H)
        i = jax.nn.sigmoid(gates[:, 0:H])
        f = jax.nn.sigmoid(gates[:, H:2 * H])
        g = jnp.tanh(gates[:, 2 * H:3 * H])
        o = jax.nn.sigmoid(gates[:, 3 * H:4 * H])
        c = f * c + i * g
        h = o * jnp.tanh(c)
        hs.append(h)

    # Epilogue (off the recurrent critical path): one fc matmul + softmax over
    # time per batch row, written batch-first directly.
    # The per-batch (T, H) hidden matrix is assembled with iota/select ops
    # (pure VPU, all single-vreg) to avoid sublane concat / reshape / transpose
    # lowerings on TPU.
    row_ids = lax.broadcasted_iota(jnp.int32, (T, H), 0)
    for b in range(B):
        hs_b = jnp.zeros((T, H), jnp.float32)
        for t in range(T):
            hs_b = jnp.where(row_ids == t,
                             jnp.broadcast_to(hs[t][b:b + 1, :], (T, H)),
                             hs_b)
        logits_b = jnp.dot(hs_b, w_fc,
                           preferred_element_type=jnp.float32) + b_fc  # (T, O)
        m = jnp.max(logits_b, axis=0, keepdims=True)
        e = jnp.exp(logits_b - m)
        denom = jnp.sum(e, axis=0, keepdims=True)
        out_ref[b] = e * pl.reciprocal(denom, approx=False)


def lstm_model_forward(tokens, params):
    """tokens: int32 (B, T); returns softmax probabilities (B, T, output_size)."""
    B, T = tokens.shape
    O = params["fc_w"].shape[1]

    # Time-major flat embedding gather (row = t*B + b): index manipulation is
    # on the tiny int32 token array, so no float transpose is materialized on
    # either side of the kernel.
    flat_idx = jnp.transpose(tokens).reshape(-1)                  # (T*B,)
    x2d = params["embedding"][flat_idx].astype(jnp.float32)       # (T*B, H)

    return pl.pallas_call(
        lstm_kernel,
        out_shape=jax.ShapeDtypeStruct((B, T, O), jnp.float32),
        in_specs=[pl.BlockSpec(memory_space=pltpu.MemorySpace.VMEM)] * 6,
        out_specs=pl.BlockSpec(memory_space=pltpu.MemorySpace.VMEM),
        # TODO(synk): for large T/H, chunk the time axis with a grid (carrying
        # h/c in scratch) to respect v7x's 64 MiB VMEM, and shard batch across
        # v7x's two TensorCores once B is large enough.
    )(x2d, params["w_ih"], params["w_hh"], params["b"],
      params["fc_w"], params["fc_b"])


def init_params(key, input_size, hidden_size, output_size):
    """Deterministic, PyTorch-shaped parameter init (synthetic), fused gate layout."""
    H = hidden_size
    ks = jax.random.split(key, 7)
    # nn.Embedding default init: N(0, 1)
    emb = jax.random.normal(ks[0], (input_size, H), jnp.float32)
    # nn.LSTM default init: U(-1/sqrt(H), 1/sqrt(H)), gate order [i, f, g, o]
    k = 1.0 / (H ** 0.5)
    w_ih = jax.random.uniform(ks[1], (4 * H, H), jnp.float32, -k, k)
    w_hh = jax.random.uniform(ks[2], (4 * H, H), jnp.float32, -k, k)
    b_ih = jax.random.uniform(ks[3], (4 * H,), jnp.float32, -k, k)
    b_hh = jax.random.uniform(ks[4], (4 * H,), jnp.float32, -k, k)
    # nn.Linear default init: U(-1/sqrt(H), 1/sqrt(H))
    fc_w = jax.random.uniform(ks[5], (output_size, H), jnp.float32, -k, k)
    fc_b = jax.random.uniform(ks[6], (output_size,), jnp.float32, -k, k)
    return {
        "embedding": emb,
        "w_ih": w_ih.T,                    # (H, 4H), gate columns [i|f|g|o]
        "w_hh": w_hh.T,                    # (H, 4H)
        "b": (b_ih + b_hh)[None, :],       # (1, 4H)
        "fc_w": fc_w.T,                    # (H, O)
        "fc_b": fc_b[None, :],             # (1, O)
    }


def reference_forward(tokens, params):
    """Pure-JAX reference matching PyTorch LSTMModel.forward semantics."""
    emb = params["embedding"][tokens].astype(jnp.float32)     # (B, T, H)
    B, T = tokens.shape
    H = params["w_hh"].shape[0]
    x_tm = jnp.transpose(emb, (1, 0, 2))                      # (T, B, H)

    def cell(carry, x_t):
        h, c = carry
        z = x_t @ params["w_ih"] + h @ params["w_hh"] + params["b"]
        i = jax.nn.sigmoid(z[:, 0:H])
        f = jax.nn.sigmoid(z[:, H:2 * H])
        g = jnp.tanh(z[:, 2 * H:3 * H])
        o = jax.nn.sigmoid(z[:, 3 * H:4 * H])
        c = f * c + i * g
        h = o * jnp.tanh(c)
        return (h, c), h

    init = (jnp.zeros((B, H), jnp.float32), jnp.zeros((B, H), jnp.float32))
    _, hs = lax.scan(cell, init, x_tm)                        # (T, B, H)
    logits = hs @ params["fc_w"] + params["fc_b"]             # (T, B, O)
    logits = jnp.transpose(logits, (1, 0, 2))                 # (B, T, O)
    return jax.nn.softmax(logits, axis=1)                     # softmax over seq dim


if __name__ == "__main__":
    input_size = 54
    output_size = 54
    hidden_size = 32
    B, T = 2, 8

    key = jax.random.PRNGKey(0)
    kp, kx = jax.random.split(key)
    params = init_params(kp, input_size, hidden_size, output_size)
    tokens = jax.random.randint(kx, (B, T), 0, input_size, dtype=jnp.int32)

    out = jax.block_until_ready(lstm_model_forward(tokens, params))
    ref = jax.block_until_ready(reference_forward(tokens, params))

    assert out.shape == (B, T, output_size), out.shape
    assert bool(jnp.allclose(out, ref, atol=1e-5, rtol=1e-5)), "mismatch vs JAX reference"
    # probabilities sum to 1 over the softmax axis (dim=1 / time)
    assert bool(jnp.allclose(out.sum(axis=1), 1.0, atol=1e-5))

    print("KERNEL_OK")
</pallas_src>

<mosaic_0001>
module attributes {stable_mosaic.version = 11 : i64} {
  func.func @lstm_kernel(%arg0: memref<16x32xf32, #tpu.memory_space<vmem>>, %arg1: memref<32x128xf32, #tpu.memory_space<vmem>>, %arg2: memref<32x128xf32, #tpu.memory_space<vmem>>, %arg3: memref<1x128xf32, #tpu.memory_space<vmem>>, %arg4: memref<32x54xf32, #tpu.memory_space<vmem>>, %arg5: memref<1x54xf32, #tpu.memory_space<vmem>>, %arg6: memref<2x8x54xf32, #tpu.memory_space<vmem>>) attributes {dimension_semantics = [], scalar_prefetch = 0 : i64, scratch_operands = 0 : i64, tpu.core_type = #tpu.core_type<tc>} {
    %c0 = arith.constant 0 : index
    %c0_0 = arith.constant 0 : index
    %0 = vector.load %arg2[%c0, %c0_0] : memref<32x128xf32, #tpu.memory_space<vmem>>, vector<32x128xf32>
    %c0_1 = arith.constant 0 : index
    %c0_2 = arith.constant 0 : index
    %1 = vector.load %arg4[%c0_1, %c0_2] : memref<32x54xf32, #tpu.memory_space<vmem>>, vector<32x54xf32>
    %c0_3 = arith.constant 0 : index
    %c0_4 = arith.constant 0 : index
    %2 = vector.load %arg5[%c0_3, %c0_4] : memref<1x54xf32, #tpu.memory_space<vmem>>, vector<1x54xf32>
    %c0_5 = arith.constant 0 : index
    %c0_6 = arith.constant 0 : index
    %3 = vector.load %arg0[%c0_5, %c0_6] : memref<16x32xf32, #tpu.memory_space<vmem>>, vector<16x32xf32>
    %c0_7 = arith.constant 0 : index
    %c0_8 = arith.constant 0 : index
    %4 = vector.load %arg1[%c0_7, %c0_8] : memref<32x128xf32, #tpu.memory_space<vmem>>, vector<32x128xf32>
    %cst = arith.constant dense<0.000000e+00> : vector<16x128xf32>
    %5 = tpu.matmul %3, %4, %cst {dimension_numbers = #tpu.dot_dimension_numbers<[1], [0], [0], [1], [0, 0, 1, 1], [], []>} : vector<16x32xf32>, vector<32x128xf32>, vector<16x128xf32> -> vector<16x128xf32>
    %c0_9 = arith.constant 0 : index
    %c0_10 = arith.constant 0 : index
    %6 = vector.load %arg3[%c0_9, %c0_10] : memref<1x128xf32, #tpu.memory_space<vmem>>, vector<1x128xf32>
    %7 = vector.broadcast %6 : vector<1x128xf32> to vector<16x128xf32>
    %8 = arith.addf %5, %7 : vector<16x128xf32>
    %cst_11 = arith.constant 0.000000e+00 : f32
    %9 = vector.broadcast %cst_11 : f32 to vector<2x32xf32>
    %cst_12 = arith.constant 0.000000e+00 : f32
    %10 = vector.broadcast %cst_12 : f32 to vector<2x32xf32>
    %11 = vector.extract_strided_slice %8 {offsets = [0, 0], sizes = [2, 128], strides = [1, 1]} : vector<16x128xf32> to vector<2x128xf32>
    %cst_13 = arith.constant dense<0.000000e+00> : vector<2x128xf32>
    %12 = tpu.matmul %9, %0, %cst_13 {dimension_numbers = #tpu.dot_dimension_numbers<[1], [0], [0], [1], [0, 0, 1, 1], [], []>} : vector<2x32xf32>, vector<32x128xf32>, vector<2x128xf32> -> vector<2x128xf32>
    %13 = arith.addf %11, %12 : vector<2x128xf32>
    %14 = vector.extract_strided_slice %13 {offsets = [0, 0], sizes = [2, 32], strides = [1, 1]} : vector<2x128xf32> to vector<2x32xf32>
    %15 = arith.negf %14 : vector<2x32xf32>
    %16 = math.exp %15 : vector<2x32xf32>
    %cst_14 = arith.constant 1.000000e+00 : f32
    %17 = vector.broadcast %cst_14 : f32 to vector<2x32xf32>
    %18 = arith.addf %17, %16 : vector<2x32xf32>
    %19 = arith.divf %17, %18 : vector<2x32xf32>
    %20 = vector.extract_strided_slice %13 {offsets = [0, 32], sizes = [2, 32], strides = [1, 1]} : vector<2x128xf32> to vector<2x32xf32>
    %21 = arith.negf %20 : vector<2x32xf32>
    %22 = math.exp %21 : vector<2x32xf32>
    %cst_15 = arith.constant 1.000000e+00 : f32
    %23 = vector.broadcast %cst_15 : f32 to vector<2x32xf32>
    %24 = arith.addf %23, %22 : vector<2x32xf32>
    %25 = arith.divf %23, %24 : vector<2x32xf32>
    %26 = vector.extract_strided_slice %13 {offsets = [0, 64], sizes = [2, 32], strides = [1, 1]} : vector<2x128xf32> to vector<2x32xf32>
    %27 = math.tanh %26 : vector<2x32xf32>
    %28 = vector.extract_strided_slice %13 {offsets = [0, 96], sizes = [2, 32], strides = [1, 1]} : vector<2x128xf32> to vector<2x32xf32>
    %29 = arith.negf %28 : vector<2x32xf32>
    %30 = math.exp %29 : vector<2x32xf32>
    %cst_16 = arith.constant 1.000000e+00 : f32
    %31 = vector.broadcast %cst_16 : f32 to vector<2x32xf32>
    %32 = arith.addf %31, %30 : vector<2x32xf32>
    %33 = arith.divf %31, %32 : vector<2x32xf32>
    %34 = arith.mulf %25, %10 : vector<2x32xf32>
    %35 = arith.mulf %19, %27 : vector<2x32xf32>
    %36 = arith.addf %34, %35 : vector<2x32xf32>
    %37 = math.tanh %36 : vector<2x32xf32>
    %38 = arith.mulf %33, %37 : vector<2x32xf32>
    %39 = vector.extract_strided_slice %8 {offsets = [2, 0], sizes = [2, 128], strides = [1, 1]} : vector<16x128xf32> to vector<2x128xf32>
    %cst_17 = arith.constant dense<0.000000e+00> : vector<2x128xf32>
    %40 = tpu.matmul %38, %0, %cst_17 {dimension_numbers = #tpu.dot_dimension_numbers<[1], [0], [0], [1], [0, 0, 1, 1], [], []>} : vector<2x32xf32>, vector<32x128xf32>, vector<2x128xf32> -> vector<2x128xf32>
    %41 = arith.addf %39, %40 : vector<2x128xf32>
    %42 = vector.extract_strided_slice %41 {offsets = [0, 0], sizes = [2, 32], strides = [1, 1]} : vector<2x128xf32> to vector<2x32xf32>
    %43 = arith.negf %42 : vector<2x32xf32>
    %44 = math.exp %43 : vector<2x32xf32>
    %cst_18 = arith.constant 1.000000e+00 : f32
    %45 = vector.broadcast %cst_18 : f32 to vector<2x32xf32>
    %46 = arith.addf %45, %44 : vector<2x32xf32>
    %47 = arith.divf %45, %46 : vector<2x32xf32>
    %48 = vector.extract_strided_slice %41 {offsets = [0, 32], sizes = [2, 32], strides = [1, 1]} : vector<2x128xf32> to vector<2x32xf32>
    %49 = arith.negf %48 : vector<2x32xf32>
    %50 = math.exp %49 : vector<2x32xf32>
    %cst_19 = arith.constant 1.000000e+00 : f32
    %51 = vector.broadcast %cst_19 : f32 to vector<2x32xf32>
    %52 = arith.addf %51, %50 : vector<2x32xf32>
    %53 = arith.divf %51, %52 : vector<2x32xf32>
    %54 = vector.extract_strided_slice %41 {offsets = [0, 64], sizes = [2, 32], strides = [1, 1]} : vector<2x128xf32> to vector<2x32xf32>
    %55 = math.tanh %54 : vector<2x32xf32>
    %56 = vector.extract_strided_slice %41 {offsets = [0, 96], sizes = [2, 32], strides = [1, 1]} : vector<2x128xf32> to vector<2x32xf32>
    %57 = arith.negf %56 : vector<2x32xf32>
    %58 = math.exp %57 : vector<2x32xf32>
    %cst_20 = arith.constant 1.000000e+00 : f32
    %59 = vector.broadcast %cst_20 : f32 to vector<2x32xf32>
    %60 = arith.addf %59, %58 : vector<2x32xf32>
    %61 = arith.divf %59, %60 : vector<2x32xf32>
    %62 = arith.mulf %53, %36 : vector<2x32xf32>
    %63 = arith.mulf %47, %55 : vector<2x32xf32>
    %64 = arith.addf %62, %63 : vector<2x32xf32>
    %65 = math.tanh %64 : vector<2x32xf32>
    %66 = arith.mulf %61, %65 : vector<2x32xf32>
    %67 = vector.extract_strided_slice %8 {offsets = [4, 0], sizes = [2, 128], strides = [1, 1]} : vector<16x128xf32> to vector<2x128xf32>
    %cst_21 = arith.constant dense<0.000000e+00> : vector<2x128xf32>
    %68 = tpu.matmul %66, %0, %cst_21 {dimension_numbers = #tpu.dot_dimension_numbers<[1], [0], [0], [1], [0, 0, 1, 1], [], []>} : vector<2x32xf32>, vector<32x128xf32>, vector<2x128xf32> -> vector<2x128xf32>
    %69 = arith.addf %67, %68 : vector<2x128xf32>
    %70 = vector.extract_strided_slice %69 {offsets = [0, 0], sizes = [2, 32], strides = [1, 1]} : vector<2x128xf32> to vector<2x32xf32>
    %71 = arith.negf %70 : vector<2x32xf32>
    %72 = math.exp %71 : vector<2x32xf32>
    %cst_22 = arith.constant 1.000000e+00 : f32
    %73 = vector.broadcast %cst_22 : f32 to vector<2x32xf32>
    %74 = arith.addf %73, %72 : vector<2x32xf32>
    %75 = arith.divf %73, %74 : vector<2x32xf32>
    %76 = vector.extract_strided_slice %69 {offsets = [0, 32], sizes = [2, 32], strides = [1, 1]} : vector<2x128xf32> to vector<2x32xf32>
    %77 = arith.negf %76 : vector<2x32xf32>
    %78 = math.exp %77 : vector<2x32xf32>
    %cst_23 = arith.constant 1.000000e+00 : f32
    %79 = vector.broadcast %cst_23 : f32 to vector<2x32xf32>
    %80 = arith.addf %79, %78 : vector<2x32xf32>
    %81 = arith.divf %79, %80 : vector<2x32xf32>
    %82 = vector.extract_strided_slice %69 {offsets = [0, 64], sizes = [2, 32], strides = [1, 1]} : vector<2x128xf32> to vector<2x32xf32>
    %83 = math.tanh %82 : vector<2x32xf32>
    %84 = vector.extract_strided_slice %69 {offsets = [0, 96], sizes = [2, 32], strides = [1, 1]} : vector<2x128xf32> to vector<2x32xf32>
    %85 = arith.negf %84 : vector<2x32xf32>
    %86 = math.exp %85 : vector<2x32xf32>
    %cst_24 = arith.constant 1.000000e+00 : f32
    %87 = vector.broadcast %cst_24 : f32 to vector<2x32xf32>
    %88 = arith.addf %87, %86 : vector<2x32xf32>
    %89 = arith.divf %87, %88 : vector<2x32xf32>
    %90 = arith.mulf %81, %64 : vector<2x32xf32>
    %91 = arith.mulf %75, %83 : vector<2x32xf32>
    %92 = arith.addf %90, %91 : vector<2x32xf32>
    %93 = math.tanh %92 : vector<2x32xf32>
    %94 = arith.mulf %89, %93 : vector<2x32xf32>
    %95 = vector.extract_strided_slice %8 {offsets = [6, 0], sizes = [2, 128], strides = [1, 1]} : vector<16x128xf32> to vector<2x128xf32>
    %cst_25 = arith.constant dense<0.000000e+00> : vector<2x128xf32>
    %96 = tpu.matmul %94, %0, %cst_25 {dimension_numbers = #tpu.dot_dimension_numbers<[1], [0], [0], [1], [0, 0, 1, 1], [], []>} : vector<2x32xf32>, vector<32x128xf32>, vector<2x128xf32> -> vector<2x128xf32>
    %97 = arith.addf %95, %96 : vector<2x128xf32>
    %98 = vector.extract_strided_slice %97 {offsets = [0, 0], sizes = [2, 32], strides = [1, 1]} : vector<2x128xf32> to vector<2x32xf32>
    %99 = arith.negf %98 : vector<2x32xf32>
    %100 = math.exp %99 : vector<2x32xf32>
    %cst_26 = arith.constant 1.000000e+00 : f32
    %101 = vector.broadcast %cst_26 : f32 to vector<2x32xf32>
    %102 = arith.addf %101, %100 : vector<2x32xf32>
    %103 = arith.divf %101, %102 : vector<2x32xf32>
    %104 = vector.extract_strided_slice %97 {offsets = [0, 32], sizes = [2, 32], strides = [1, 1]} : vector<2x128xf32> to vector<2x32xf32>
    %105 = arith.negf %104 : vector<2x32xf32>
    %106 = math.exp %105 : vector<2x32xf32>
    %cst_27 = arith.constant 1.000000e+00 : f32
    %107 = vector.broadcast %cst_27 : f32 to vector<2x32xf32>
    %108 = arith.addf %107, %106 : vector<2x32xf32>
    %109 = arith.divf %107, %108 : vector<2x32xf32>
    %110 = vector.extract_strided_slice %97 {offsets = [0, 64], sizes = [2, 32], strides = [1, 1]} : vector<2x128xf32> to vector<2x32xf32>
    %111 = math.tanh %110 : vector<2x32xf32>
    %112 = vector.extract_strided_slice %97 {offsets = [0, 96], sizes = [2, 32], strides = [1, 1]} : vector<2x128xf32> to vector<2x32xf32>
    %113 = arith.negf %112 : vector<2x32xf32>
    %114 = math.exp %113 : vector<2x32xf32>
    %cst_28 = arith.constant 1.000000e+00 : f32
    %115 = vector.broadcast %cst_28 : f32 to vector<2x32xf32>
    %116 = arith.addf %115, %114 : vector<2x32xf32>
    %117 = arith.divf %115, %116 : vector<2x32xf32>
    %118 = arith.mulf %109, %92 : vector<2x32xf32>
    %119 = arith.mulf %103, %111 : vector<2x32xf32>
    %120 = arith.addf %118, %119 : vector<2x32xf32>
    %121 = math.tanh %120 : vector<2x32xf32>
    %122 = arith.mulf %117, %121 : vector<2x32xf32>
    %123 = vector.extract_strided_slice %8 {offsets = [8, 0], sizes = [2, 128], strides = [1, 1]} : vector<16x128xf32> to vector<2x128xf32>
    %cst_29 = arith.constant dense<0.000000e+00> : vector<2x128xf32>
    %124 = tpu.matmul %122, %0, %cst_29 {dimension_numbers = #tpu.dot_dimension_numbers<[1], [0], [0], [1], [0, 0, 1, 1], [], []>} : vector<2x32xf32>, vector<32x128xf32>, vector<2x128xf32> -> vector<2x128xf32>
    %125 = arith.addf %123, %124 : vector<2x128xf32>
    %126 = vector.extract_strided_slice %125 {offsets = [0, 0], sizes = [2, 32], strides = [1, 1]} : vector<2x128xf32> to vector<2x32xf32>
    %127 = arith.negf %126 : vector<2x32xf32>
    %128 = math.exp %127 : vector<2x32xf32>
    %cst_30 = arith.constant 1.000000e+00 : f32
    %129 = vector.broadcast %cst_30 : f32 to vector<2x32xf32>
    %130 = arith.addf %129, %128 : vector<2x32xf32>
    %131 = arith.divf %129, %130 : vector<2x32xf32>
    %132 = vector.extract_strided_slice %125 {offsets = [0, 32], sizes = [2, 32], strides = [1, 1]} : vector<2x128xf32> to vector<2x32xf32>
    %133 = arith.negf %132 : vector<2x32xf32>
    %134 = math.exp %133 : vector<2x32xf32>
    %cst_31 = arith.constant 1.000000e+00 : f32
    %135 = vector.broadcast %cst_31 : f32 to vector<2x32xf32>
    %136 = arith.addf %135, %134 : vector<2x32xf32>
    %137 = arith.divf %135, %136 : vector<2x32xf32>
    %138 = vector.extract_strided_slice %125 {offsets = [0, 64], sizes = [2, 32], strides = [1, 1]} : vector<2x128xf32> to vector<2x32xf32>
    %139 = math.tanh %138 : vector<2x32xf32>
    %140 = vector.extract_strided_slice %125 {offsets = [0, 96], sizes = [2, 32], strides = [1, 1]} : vector<2x128xf32> to vector<2x32xf32>
    %141 = arith.negf %140 : vector<2x32xf32>
    %142 = math.exp %141 : vector<2x32xf32>
    %cst_32 = arith.constant 1.000000e+00 : f32
    %143 = vector.broadcast %cst_32 : f32 to vector<2x32xf32>
    %144 = arith.addf %143, %142 : vector<2x32xf32>
    %145 = arith.divf %143, %144 : vector<2x32xf32>
    %146 = arith.mulf %137, %120 : vector<2x32xf32>
    %147 = arith.mulf %131, %139 : vector<2x32xf32>
    %148 = arith.addf %146, %147 : vector<2x32xf32>
    %149 = math.tanh %148 : vector<2x32xf32>
    %150 = arith.mulf %145, %149 : vector<2x32xf32>
    %151 = vector.extract_strided_slice %8 {offsets = [10, 0], sizes = [2, 128], strides = [1, 1]} : vector<16x128xf32> to vector<2x128xf32>
    %cst_33 = arith.constant dense<0.000000e+00> : vector<2x128xf32>
    %152 = tpu.matmul %150, %0, %cst_33 {dimension_numbers = #tpu.dot_dimension_numbers<[1], [0], [0], [1], [0, 0, 1, 1], [], []>} : vector<2x32xf32>, vector<32x128xf32>, vector<2x128xf32> -> vector<2x128xf32>
    %153 = arith.addf %151, %152 : vector<2x128xf32>
    %154 = vector.extract_strided_slice %153 {offsets = [0, 0], sizes = [2, 32], strides = [1, 1]} : vector<2x128xf32> to vector<2x32xf32>
    %155 = arith.negf %154 : vector<2x32xf32>
    %156 = math.exp %155 : vector<2x32xf32>
    %cst_34 = arith.constant 1.000000e+00 : f32
    %157 = vector.broadcast %cst_34 : f32 to vector<2x32xf32>
    %158 = arith.addf %157, %156 : vector<2x32xf32>
    %159 = arith.divf %157, %158 : vector<2x32xf32>
    %160 = vector.extract_strided_slice %153 {offsets = [0, 32], sizes = [2, 32], strides = [1, 1]} : vector<2x128xf32> to vector<2x32xf32>
    %161 = arith.negf %160 : vector<2x32xf32>
    %162 = math.exp %161 : vector<2x32xf32>
    %cst_35 = arith.constant 1.000000e+00 : f32
    %163 = vector.broadcast %cst_35 : f32 to vector<2x32xf32>
    %164 = arith.addf %163, %162 : vector<2x32xf32>
    %165 = arith.divf %163, %164 : vector<2x32xf32>
    %166 = vector.extract_strided_slice %153 {offsets = [0, 64], sizes = [2, 32], strides = [1, 1]} : vector<2x128xf32> to vector<2x32xf32>
    %167 = math.tanh %166 : vector<2x32xf32>
    %168 = vector.extract_strided_slice %153 {offsets = [0, 96], sizes = [2, 32], strides = [1, 1]} : vector<2x128xf32> to vector<2x32xf32>
    %169 = arith.negf %168 : vector<2x32xf32>
    %170 = math.exp %169 : vector<2x32xf32>
    %cst_36 = arith.constant 1.000000e+00 : f32
    %171 = vector.broadcast %cst_36 : f32 to vector<2x32xf32>
    %172 = arith.addf %171, %170 : vector<2x32xf32>
    %173 = arith.divf %171, %172 : vector<2x32xf32>
    %174 = arith.mulf %165, %148 : vector<2x32xf32>
    %175 = arith.mulf %159, %167 : vector<2x32xf32>
    %176 = arith.addf %174, %175 : vector<2x32xf32>
    %177 = math.tanh %176 : vector<2x32xf32>
    %178 = arith.mulf %173, %177 : vector<2x32xf32>
    %179 = vector.extract_strided_slice %8 {offsets = [12, 0], sizes = [2, 128], strides = [1, 1]} : vector<16x128xf32> to vector<2x128xf32>
    %cst_37 = arith.constant dense<0.000000e+00> : vector<2x128xf32>
    %180 = tpu.matmul %178, %0, %cst_37 {dimension_numbers = #tpu.dot_dimension_numbers<[1], [0], [0], [1], [0, 0, 1, 1], [], []>} : vector<2x32xf32>, vector<32x128xf32>, vector<2x128xf32> -> vector<2x128xf32>
    %181 = arith.addf %179, %180 : vector<2x128xf32>
    %182 = vector.extract_strided_slice %181 {offsets = [0, 0], sizes = [2, 32], strides = [1, 1]} : vector<2x128xf32> to vector<2x32xf32>
    %183 = arith.negf %182 : vector<2x32xf32>
    %184 = math.exp %183 : vector<2x32xf32>
    %cst_38 = arith.constant 1.000000e+00 : f32
    %185 = vector.broadcast %cst_38 : f32 to vector<2x32xf32>
    %186 = arith.addf %185, %184 : vector<2x32xf32>
    %187 = arith.divf %185, %186 : vector<2x32xf32>
    %188 = vector.extract_strided_slice %181 {offsets = [0, 32], sizes = [2, 32], strides = [1, 1]} : vector<2x128xf32> to vector<2x32xf32>
    %189 = arith.negf %188 : vector<2x32xf32>
    %190 = math.exp %189 : vector<2x32xf32>
    %cst_39 = arith.constant 1.000000e+00 : f32
    %191 = vector.broadcast %cst_39 : f32 to vector<2x32xf32>
    %192 = arith.addf %191, %190 : vector<2x32xf32>
    %193 = arith.divf %191, %192 : vector<2x32xf32>
    %194 = vector.extract_strided_slice %181 {offsets = [0, 64], sizes = [2, 32], strides = [1, 1]} : vector<2x128xf32> to vector<2x32xf32>
    %195 = math.tanh %194 : vector<2x32xf32>
    %196 = vector.extract_strided_slice %181 {offsets = [0, 96], sizes = [2, 32], strides = [1, 1]} : vector<2x128xf32> to vector<2x32xf32>
    %197 = arith.negf %196 : vector<2x32xf32>
    %198 = math.exp %197 : vector<2x32xf32>
    %cst_40 = arith.constant 1.000000e+00 : f32
    %199 = vector.broadcast %cst_40 : f32 to vector<2x32xf32>
    %200 = arith.addf %199, %198 : vector<2x32xf32>
    %201 = arith.divf %199, %200 : vector<2x32xf32>
    %202 = arith.mulf %193, %176 : vector<2x32xf32>
    %203 = arith.mulf %187, %195 : vector<2x32xf32>
    %204 = arith.addf %202, %203 : vector<2x32xf32>
    %205 = math.tanh %204 : vector<2x32xf32>
    %206 = arith.mulf %201, %205 : vector<2x32xf32>
    %207 = vector.extract_strided_slice %8 {offsets = [14, 0], sizes = [2, 128], strides = [1, 1]} : vector<16x128xf32> to vector<2x128xf32>
    %cst_41 = arith.constant dense<0.000000e+00> : vector<2x128xf32>
    %208 = tpu.matmul %206, %0, %cst_41 {dimension_numbers = #tpu.dot_dimension_numbers<[1], [0], [0], [1], [0, 0, 1, 1], [], []>} : vector<2x32xf32>, vector<32x128xf32>, vector<2x128xf32> -> vector<2x128xf32>
    %209 = arith.addf %207, %208 : vector<2x128xf32>
    %210 = vector.extract_strided_slice %209 {offsets = [0, 0], sizes = [2, 32], strides = [1, 1]} : vector<2x128xf32> to vector<2x32xf32>
    %211 = arith.negf %210 : vector<2x32xf32>
    %212 = math.exp %211 : vector<2x32xf32>
    %cst_42 = arith.constant 1.000000e+00 : f32
    %213 = vector.broadcast %cst_42 : f32 to vector<2x32xf32>
    %214 = arith.addf %213, %212 : vector<2x32xf32>
    %215 = arith.divf %213, %214 : vector<2x32xf32>
    %216 = vector.extract_strided_slice %209 {offsets = [0, 32], sizes = [2, 32], strides = [1, 1]} : vector<2x128xf32> to vector<2x32xf32>
    %217 = arith.negf %216 : vector<2x32xf32>
    %218 = math.exp %217 : vector<2x32xf32>
    %cst_43 = arith.constant 1.000000e+00 : f32
    %219 = vector.broadcast %cst_43 : f32 to vector<2x32xf32>
    %220 = arith.addf %219, %218 : vector<2x32xf32>
    %221 = arith.divf %219, %220 : vector<2x32xf32>
    %222 = vector.extract_strided_slice %209 {offsets = [0, 64], sizes = [2, 32], strides = [1, 1]} : vector<2x128xf32> to vector<2x32xf32>
    %223 = math.tanh %222 : vector<2x32xf32>
    %224 = vector.extract_strided_slice %209 {offsets = [0, 96], sizes = [2, 32], strides = [1, 1]} : vector<2x128xf32> to vector<2x32xf32>
    %225 = arith.negf %224 : vector<2x32xf32>
    %226 = math.exp %225 : vector<2x32xf32>
    %cst_44 = arith.constant 1.000000e+00 : f32
    %227 = vector.broadcast %cst_44 : f32 to vector<2x32xf32>
    %228 = arith.addf %227, %226 : vector<2x32xf32>
    %229 = arith.divf %227, %228 : vector<2x32xf32>
    %230 = arith.mulf %221, %204 : vector<2x32xf32>
    %231 = arith.mulf %215, %223 : vector<2x32xf32>
    %232 = arith.addf %230, %231 : vector<2x32xf32>
    %233 = math.tanh %232 : vector<2x32xf32>
    %234 = arith.mulf %229, %233 : vector<2x32xf32>
    %235 = tpu.iota {dimensions = array<i32: 0>} : vector<8x32xi32>
    %cst_45 = arith.constant 0.000000e+00 : f32
    %236 = vector.broadcast %cst_45 : f32 to vector<8x32xf32>
    %c0_i32 = arith.constant 0 : i32
    %237 = vector.broadcast %c0_i32 : i32 to vector<8x32xi32>
    %238 = arith.cmpi eq, %235, %237 : vector<8x32xi32>
    %239 = vector.extract_strided_slice %38 {offsets = [0, 0], sizes = [1, 32], strides = [1, 1]} : vector<2x32xf32> to vector<1x32xf32>
    %240 = vector.shape_cast %239 : vector<1x32xf32> to vector<1x32xf32>
    %241 = vector.broadcast %240 : vector<1x32xf32> to vector<8x32xf32>
    %242 = arith.select %238, %241, %236 : vector<8x32xi1>, vector<8x32xf32>
    %c1_i32 = arith.constant 1 : i32
    %243 = vector.broadcast %c1_i32 : i32 to vector<8x32xi32>
    %244 = arith.cmpi eq, %235, %243 : vector<8x32xi32>
    %245 = vector.extract_strided_slice %66 {offsets = [0, 0], sizes = [1, 32], strides = [1, 1]} : vector<2x32xf32> to vector<1x32xf32>
    %246 = vector.shape_cast %245 : vector<1x32xf32> to vector<1x32xf32>
    %247 = vector.broadcast %246 : vector<1x32xf32> to vector<8x32xf32>
    %248 = arith.select %244, %247, %242 : vector<8x32xi1>, vector<8x32xf32>
    %c2_i32 = arith.constant 2 : i32
    %249 = vector.broadcast %c2_i32 : i32 to vector<8x32xi32>
    %250 = arith.cmpi eq, %235, %249 : vector<8x32xi32>
    %251 = vector.extract_strided_slice %94 {offsets = [0, 0], sizes = [1, 32], strides = [1, 1]} : vector<2x32xf32> to vector<1x32xf32>
    %252 = vector.shape_cast %251 : vector<1x32xf32> to vector<1x32xf32>
    %253 = vector.broadcast %252 : vector<1x32xf32> to vector<8x32xf32>
    %254 = arith.select %250, %253, %248 : vector<8x32xi1>, vector<8x32xf32>
    %c3_i32 = arith.constant 3 : i32
    %255 = vector.broadcast %c3_i32 : i32 to vector<8x32xi32>
    %256 = arith.cmpi eq, %235, %255 : vector<8x32xi32>
    %257 = vector.extract_strided_slice %122 {offsets = [0, 0], sizes = [1, 32], strides = [1, 1]} : vector<2x32xf32> to vector<1x32xf32>
    %258 = vector.shape_cast %257 : vector<1x32xf32> to vector<1x32xf32>
    %259 = vector.broadcast %258 : vector<1x32xf32> to vector<8x32xf32>
    %260 = arith.select %256, %259, %254 : vector<8x32xi1>, vector<8x32xf32>
    %c4_i32 = arith.constant 4 : i32
    %261 = vector.broadcast %c4_i32 : i32 to vector<8x32xi32>
    %262 = arith.cmpi eq, %235, %261 : vector<8x32xi32>
    %263 = vector.extract_strided_slice %150 {offsets = [0, 0], sizes = [1, 32], strides = [1, 1]} : vector<2x32xf32> to vector<1x32xf32>
    %264 = vector.shape_cast %263 : vector<1x32xf32> to vector<1x32xf32>
    %265 = vector.broadcast %264 : vector<1x32xf32> to vector<8x32xf32>
    %266 = arith.select %262, %265, %260 : vector<8x32xi1>, vector<8x32xf32>
    %c5_i32 = arith.constant 5 : i32
    %267 = vector.broadcast %c5_i32 : i32 to vector<8x32xi32>
    %268 = arith.cmpi eq, %235, %267 : vector<8x32xi32>
    %269 = vector.extract_strided_slice %178 {offsets = [0, 0], sizes = [1, 32], strides = [1, 1]} : vector<2x32xf32> to vector<1x32xf32>
    %270 = vector.shape_cast %269 : vector<1x32xf32> to vector<1x32xf32>
    %271 = vector.broadcast %270 : vector<1x32xf32> to vector<8x32xf32>
    %272 = arith.select %268, %271, %266 : vector<8x32xi1>, vector<8x32xf32>
    %c6_i32 = arith.constant 6 : i32
    %273 = vector.broadcast %c6_i32 : i32 to vector<8x32xi32>
    %274 = arith.cmpi eq, %235, %273 : vector<8x32xi32>
    %275 = vector.extract_strided_slice %206 {offsets = [0, 0], sizes = [1, 32], strides = [1, 1]} : vector<2x32xf32> to vector<1x32xf32>
    %276 = vector.shape_cast %275 : vector<1x32xf32> to vector<1x32xf32>
    %277 = vector.broadcast %276 : vector<1x32xf32> to vector<8x32xf32>
    %278 = arith.select %274, %277, %272 : vector<8x32xi1>, vector<8x32xf32>
    %c7_i32 = arith.constant 7 : i32
    %279 = vector.broadcast %c7_i32 : i32 to vector<8x32xi32>
    %280 = arith.cmpi eq, %235, %279 : vector<8x32xi32>
    %281 = vector.extract_strided_slice %234 {offsets = [0, 0], sizes = [1, 32], strides = [1, 1]} : vector<2x32xf32> to vector<1x32xf32>
    %282 = vector.shape_cast %281 : vector<1x32xf32> to vector<1x32xf32>
    %283 = vector.broadcast %282 : vector<1x32xf32> to vector<8x32xf32>
    %284 = arith.select %280, %283, %278 : vector<8x32xi1>, vector<8x32xf32>
    %cst_46 = arith.constant dense<0.000000e+00> : vector<8x54xf32>
    %285 = tpu.matmul %284, %1, %cst_46 {dimension_numbers = #tpu.dot_dimension_numbers<[1], [0], [0], [1], [0, 0, 1, 1], [], []>} : vector<8x32xf32>, vector<32x54xf32>, vector<8x54xf32> -> vector<8x54xf32>
    %286 = vector.broadcast %2 : vector<1x54xf32> to vector<8x54xf32>
    %287 = arith.addf %285, %286 : vector<8x54xf32>
    %cst_47 = arith.constant dense<0xFF800000> : vector<54xf32>
    %288 = vector.multi_reduction <maximumf>, %287, %cst_47 [0] : vector<8x54xf32> to vector<54xf32>
    %289 = vector.shape_cast %288 : vector<54xf32> to vector<1x54xf32>
    %290 = vector.broadcast %289 : vector<1x54xf32> to vector<8x54xf32>
    %291 = arith.subf %287, %290 : vector<8x54xf32>
    %292 = math.exp %291 : vector<8x54xf32>
    %cst_48 = arith.constant dense<0.000000e+00> : vector<54xf32>
    %293 = vector.multi_reduction <add>, %292, %cst_48 [0] : vector<8x54xf32> to vector<54xf32>
    %294 = vector.shape_cast %293 : vector<54xf32> to vector<1x54xf32>
    %295 = tpu.reciprocal %294 : vector<1x54xf32> -> vector<1x54xf32>
    %296 = vector.broadcast %295 : vector<1x54xf32> to vector<8x54xf32>
    %297 = arith.mulf %292, %296 : vector<8x54xf32>
    %c0_49 = arith.constant 0 : index
    %c0_50 = arith.constant 0 : index
    %c0_51 = arith.constant 0 : index
    %298 = vector.load %arg6[%c0_49, %c0_50, %c0_51] : memref<2x8x54xf32, #tpu.memory_space<vmem>>, vector<1x8x54xf32>
    %299 = vector.shape_cast %298 : vector<1x8x54xf32> to vector<8x54xf32>
    %300 = vector.shape_cast %297 : vector<8x54xf32> to vector<1x8x54xf32>
    tpu.vector_store %arg6[%c0_49, %c0_50, %c0_51], %300 {strides = array<i32>} : memref<2x8x54xf32, #tpu.memory_space<vmem>>, vector<1x8x54xf32>,
    %cst_52 = arith.constant 0.000000e+00 : f32
    %301 = vector.broadcast %cst_52 : f32 to vector<8x32xf32>
    %c0_i32_53 = arith.constant 0 : i32
    %302 = vector.broadcast %c0_i32_53 : i32 to vector<8x32xi32>
    %303 = arith.cmpi eq, %235, %302 : vector<8x32xi32>
    %304 = vector.extract_strided_slice %38 {offsets = [1, 0], sizes = [1, 32], strides = [1, 1]} : vector<2x32xf32> to vector<1x32xf32>
    %305 = vector.shape_cast %304 : vector<1x32xf32> to vector<1x32xf32>
    %306 = vector.broadcast %305 : vector<1x32xf32> to vector<8x32xf32>
    %307 = arith.select %303, %306, %301 : vector<8x32xi1>, vector<8x32xf32>
    %c1_i32_54 = arith.constant 1 : i32
    %308 = vector.broadcast %c1_i32_54 : i32 to vector<8x32xi32>
    %309 = arith.cmpi eq, %235, %308 : vector<8x32xi32>
    %310 = vector.extract_strided_slice %66 {offsets = [1, 0], sizes = [1, 32], strides = [1, 1]} : vector<2x32xf32> to vector<1x32xf32>
    %311 = vector.shape_cast %310 : vector<1x32xf32> to vector<1x32xf32>
    %312 = vector.broadcast %311 : vector<1x32xf32> to vector<8x32xf32>
    %313 = arith.select %309, %312, %307 : vector<8x32xi1>, vector<8x32xf32>
    %c2_i32_55 = arith.constant 2 : i32
    %314 = vector.broadcast %c2_i32_55 : i32 to vector<8x32xi32>
    %315 = arith.cmpi eq, %235, %314 : vector<8x32xi32>
    %316 = vector.extract_strided_slice %94 {offsets = [1, 0], sizes = [1, 32], strides = [1, 1]} : vector<2x32xf32> to vector<1x32xf32>
    %317 = vector.shape_cast %316 : vector<1x32xf32> to vector<1x32xf32>
    %318 = vector.broadcast %317 : vector<1x32xf32> to vector<8x32xf32>
    %319 = arith.select %315, %318, %313 : vector<8x32xi1>, vector<8x32xf32>
    %c3_i32_56 = arith.constant 3 : i32
    %320 = vector.broadcast %c3_i32_56 : i32 to vector<8x32xi32>
    %321 = arith.cmpi eq, %235, %320 : vector<8x32xi32>
    %322 = vector.extract_strided_slice %122 {offsets = [1, 0], sizes = [1, 32], strides = [1, 1]} : vector<2x32xf32> to vector<1x32xf32>
    %323 = vector.shape_cast %322 : vector<1x32xf32> to vector<1x32xf32>
    %324 = vector.broadcast %323 : vector<1x32xf32> to vector<8x32xf32>
    %325 = arith.select %321, %324, %319 : vector<8x32xi1>, vector<8x32xf32>
    %c4_i32_57 = arith.constant 4 : i32
    %326 = vector.broadcast %c4_i32_57 : i32 to vector<8x32xi32>
    %327 = arith.cmpi eq, %235, %326 : vector<8x32xi32>
    %328 = vector.extract_strided_slice %150 {offsets = [1, 0], sizes = [1, 32], strides = [1, 1]} : vector<2x32xf32> to vector<1x32xf32>
    %329 = vector.shape_cast %328 : vector<1x32xf32> to vector<1x32xf32>
    %330 = vector.broadcast %329 : vector<1x32xf32> to vector<8x32xf32>
    %331 = arith.select %327, %330, %325 : vector<8x32xi1>, vector<8x32xf32>
    %c5_i32_58 = arith.constant 5 : i32
    %332 = vector.broadcast %c5_i32_58 : i32 to vector<8x32xi32>
    %333 = arith.cmpi eq, %235, %332 : vector<8x32xi32>
    %334 = vector.extract_strided_slice %178 {offsets = [1, 0], sizes = [1, 32], strides = [1, 1]} : vector<2x32xf32> to vector<1x32xf32>
    %335 = vector.shape_cast %334 : vector<1x32xf32> to vector<1x32xf32>
    %336 = vector.broadcast %335 : vector<1x32xf32> to vector<8x32xf32>
    %337 = arith.select %333, %336, %331 : vector<8x32xi1>, vector<8x32xf32>
    %c6_i32_59 = arith.constant 6 : i32
    %338 = vector.broadcast %c6_i32_59 : i32 to vector<8x32xi32>
    %339 = arith.cmpi eq, %235, %338 : vector<8x32xi32>
    %340 = vector.extract_strided_slice %206 {offsets = [1, 0], sizes = [1, 32], strides = [1, 1]} : vector<2x32xf32> to vector<1x32xf32>
    %341 = vector.shape_cast %340 : vector<1x32xf32> to vector<1x32xf32>
    %342 = vector.broadcast %341 : vector<1x32xf32> to vector<8x32xf32>
    %343 = arith.select %339, %342, %337 : vector<8x32xi1>, vector<8x32xf32>
    %c7_i32_60 = arith.constant 7 : i32
    %344 = vector.broadcast %c7_i32_60 : i32 to vector<8x32xi32>
    %345 = arith.cmpi eq, %235, %344 : vector<8x32xi32>
    %346 = vector.extract_strided_slice %234 {offsets = [1, 0], sizes = [1, 32], strides = [1, 1]} : vector<2x32xf32> to vector<1x32xf32>
    %347 = vector.shape_cast %346 : vector<1x32xf32> to vector<1x32xf32>
    %348 = vector.broadcast %347 : vector<1x32xf32> to vector<8x32xf32>
    %349 = arith.select %345, %348, %343 : vector<8x32xi1>, vector<8x32xf32>
    %cst_61 = arith.constant dense<0.000000e+00> : vector<8x54xf32>
    %350 = tpu.matmul %349, %1, %cst_61 {dimension_numbers = #tpu.dot_dimension_numbers<[1], [0], [0], [1], [0, 0, 1, 1], [], []>} : vector<8x32xf32>, vector<32x54xf32>, vector<8x54xf32> -> vector<8x54xf32>
    %351 = vector.broadcast %2 : vector<1x54xf32> to vector<8x54xf32>
    %352 = arith.addf %350, %351 : vector<8x54xf32>
    %cst_62 = arith.constant dense<0xFF800000> : vector<54xf32>
    %353 = vector.multi_reduction <maximumf>, %352, %cst_62 [0] : vector<8x54xf32> to vector<54xf32>
    %354 = vector.shape_cast %353 : vector<54xf32> to vector<1x54xf32>
    %355 = vector.broadcast %354 : vector<1x54xf32> to vector<8x54xf32>
    %356 = arith.subf %352, %355 : vector<8x54xf32>
    %357 = math.exp %356 : vector<8x54xf32>
    %cst_63 = arith.constant dense<0.000000e+00> : vector<54xf32>
    %358 = vector.multi_reduction <add>, %357, %cst_63 [0] : vector<8x54xf32> to vector<54xf32>
    %359 = vector.shape_cast %358 : vector<54xf32> to vector<1x54xf32>
    %360 = tpu.reciprocal %359 : vector<1x54xf32> -> vector<1x54xf32>
    %361 = vector.broadcast %360 : vector<1x54xf32> to vector<8x54xf32>
    %362 = arith.mulf %357, %361 : vector<8x54xf32>
    %c1 = arith.constant 1 : index
    %c0_64 = arith.constant 0 : index
    %c0_65 = arith.constant 0 : index
    %363 = vector.load %arg6[%c1, %c0_64, %c0_65] : memref<2x8x54xf32, #tpu.memory_space<vmem>>, vector<1x8x54xf32>
    %364 = vector.shape_cast %363 : vector<1x8x54xf32> to vector<8x54xf32>
    %365 = vector.shape_cast %362 : vector<8x54xf32> to vector<1x8x54xf32>
    tpu.vector_store %arg6[%c1, %c0_64, %c0_65], %365 {strides = array<i32>} : memref<2x8x54xf32, #tpu.memory_space<vmem>>, vector<1x8x54xf32>,
    return
  }
}

</mosaic_0001>

<llo_original>
// kernel: tpu_custom_call.1
$region0: #{tpu_custom_call.1}
  #allocation0 [shape = 'u32[]', space=smem, size = 0x4, offset = 0x4, fixed_abs, tag = 'smem constant byte address 0x4 - core index']
  #allocation1 [shape = 'u32[144,128]{1,0:T(1,128)}', space=vmem, size = 0x12000, scoped, tag = 'internal scratch']
  %s0 = inlined_call_operand.hbm [shape: f32[16,32], index: 0, kind: input, shape index: {}]
  %s1 = inlined_call_operand.hbm [shape: f32[32,128], index: 1, kind: input, shape index: {}]
  %s2 = inlined_call_operand.hbm [shape: f32[32,128], index: 2, kind: input, shape index: {}]
  %s3 = inlined_call_operand.vmem [shape: f32[1,128], index: 3, kind: input, shape index: {}]
  %s4 = inlined_call_operand.hbm [shape: f32[32,54], index: 4, kind: input, shape index: {}]
  %s5 = inlined_call_operand.vmem [shape: f32[1,54], index: 5, kind: input, shape index: {}]
  %s6 = inlined_call_operand.hbm [shape: f32[2,8,54], index: 6, kind: output, shape index: {}]
  %s7 = sld [smem:[#allocation0]]
  $region50: #{tpu_custom_call.1} parent=0
    _
  %s9 = ssub.s32 1, %s7
  %s10 = scalar_select 0, %s9, %s7
  $region1: #{tpu_custom_call.1} parent=0
    #allocation2 [shape = 'u8[8192]{0}', space=vmem, size = 0x2000, scoped, tag = 'input window, operand 0, single buffered']
    #allocation3 [shape = 's32[1]{0}', space=sflag, size = 0x4, scoped, tag = 'scoped memory for tpu_custom_call.1']
    #allocation4 [shape = 's32[1]{0}', space=sflag, size = 0x4, scoped, tag = 'scoped memory for tpu_custom_call.1']
    #allocation5 [shape = 'u8[16384]{0}', space=vmem, size = 0x4000, scoped, tag = 'input window, operand 1, single buffered']
    #allocation6 [shape = 's32[1]{0}', space=sflag, size = 0x4, scoped, tag = 'scoped memory for tpu_custom_call.1']
    #allocation7 [shape = 'u8[16384]{0}', space=vmem, size = 0x4000, scoped, tag = 'input window, operand 2, single buffered']
    #allocation8 [shape = 'u8[16384]{0}', space=vmem, size = 0x4000, scoped, tag = 'input window, operand 4, single buffered']
    #allocation9 [shape = 's32[1]{0}', space=sflag, size = 0x4, scoped, tag = 'scoped memory for tpu_custom_call.1']
    #allocation10 [shape = 'u8[8192]{0}', space=vmem, size = 0x2000, scoped, tag = 'output window, operand 0, single buffered']
    %11 = vsyncpa [#allocation3], 0
    %12 = vsyncpa [#allocation6], 0
    %13 = vsyncpa [#allocation9], 0
    %14 = vsyncpa [#allocation4], 0
    // Predicated region
    $region2: #{tpu_custom_call.1} parent=1 // pred_check
      _
    $region3: #{tpu_custom_call.1} parent=1 // pred_check_branch
      %16 = sbr.rel (0) target = $region5
    $region4: #{tpu_custom_call.1} parent=1 // pred_region
      %s18 = ssub.s32 256, 256
      %19 = vsyncadd [#allocation3], %s18
      %s20 = sshll.u32 [#allocation2], 4
      %s21 = int_to_ptr.vmem [resolvable:$true] %s20
      %26 = dma.hbm_to_vmem [thread:$0]  %s0, 256, %s21, [#allocation3], 128, 128, 8
    $region5: #{tpu_custom_call.1} parent=1 // pred_fallthru
      _
    // Predicated region
    $region6: #{tpu_custom_call.1} parent=1 // pred_check
      _
    $region7: #{tpu_custom_call.1} parent=1 // pred_check_branch
      %28 = sbr.rel (0) target = $region9
    $region8: #{tpu_custom_call.1} parent=1 // pred_region
      %s30 = ssub.s32 512, 512
      %31 = vsyncadd [#allocation6], %s30
      %s32 = sshll.u32 [#allocation5], 4
      %s33 = int_to_ptr.vmem [resolvable:$true] %s32
      %38 = dma.hbm_to_vmem [thread:$0]  %s1, 512, %s33, [#allocation6], 128, 128, 8
    $region9: #{tpu_custom_call.1} parent=1 // pred_fallthru
      _
    // Predicated region
    $region10: #{tpu_custom_call.1} parent=1 // pred_check
      _
    $region11: #{tpu_custom_call.1} parent=1 // pred_check_branch
      %40 = sbr.rel (0) target = $region13
    $region12: #{tpu_custom_call.1} parent=1 // pred_region
      %s42 = ssub.s32 512, 512
      %43 = vsyncadd [#allocation6], %s42
      %s44 = sshll.u32 [#allocation7], 4
      %s45 = int_to_ptr.vmem [resolvable:$true] %s44
      %50 = dma.hbm_to_vmem [thread:$0]  %s2, 512, %s45, [#allocation6], 128, 128, 8
    $region13: #{tpu_custom_call.1} parent=1 // pred_fallthru
      _
    // Predicated region
    $region14: #{tpu_custom_call.1} parent=1 // pred_check
      _
    $region15: #{tpu_custom_call.1} parent=1 // pred_check_branch
      %52 = sbr.rel (0) target = $region17
    $region16: #{tpu_custom_call.1} parent=1 // pred_region
      _
    $region17: #{tpu_custom_call.1} parent=1 // pred_fallthru
      _
    // Predicated region
    $region18: #{tpu_custom_call.1} parent=1 // pred_check
      _
    $region19: #{tpu_custom_call.1} parent=1 // pred_check_branch
      %54 = sbr.rel (0) target = $region21
    $region20: #{tpu_custom_call.1} parent=1 // pred_region
      %s56 = ssub.s32 512, 512
      %57 = vsyncadd [#allocation9], %s56
      %s58 = sshll.u32 [#allocation8], 4
      %s59 = int_to_ptr.vmem [resolvable:$true] %s58
      %64 = dma.hbm_to_vmem [thread:$0]  %s4, 512, %s59, [#allocation9], 128, 128, 8
    $region21: #{tpu_custom_call.1} parent=1 // pred_fallthru
      _
    // Predicated region
    $region22: #{tpu_custom_call.1} parent=1 // pred_check
      _
    $region23: #{tpu_custom_call.1} parent=1 // pred_check_branch
      %66 = sbr.rel (0) target = $region25
    $region24: #{tpu_custom_call.1} parent=1 // pred_region
      _
    $region25: #{tpu_custom_call.1} parent=1 // pred_fallthru
      _
    // Predicated region
    $region26: #{tpu_custom_call.1} parent=1 // pred_check
      _
    $region27: #{tpu_custom_call.1} parent=1 // pred_check_branch
      %68 = sbr.rel (0) target = $region29
    $region28: #{tpu_custom_call.1} parent=1 // pred_region
      %69 = dma.done [#allocation3], 256
    $region29: #{tpu_custom_call.1} parent=1 // pred_fallthru
      _
    // Predicated region
    $region30: #{tpu_custom_call.1} parent=1 // pred_check
      _
    $region31: #{tpu_custom_call.1} parent=1 // pred_check_branch
      %71 = sbr.rel (0) target = $region33
    $region32: #{tpu_custom_call.1} parent=1 // pred_region
      %72 = dma.done [#allocation6], 512
    $region33: #{tpu_custom_call.1} parent=1 // pred_fallthru
      _
    // Predicated region
    $region34: #{tpu_custom_call.1} parent=1 // pred_check
      _
    $region35: #{tpu_custom_call.1} parent=1 // pred_check_branch
      %74 = sbr.rel (0) target = $region37
    $region36: #{tpu_custom_call.1} parent=1 // pred_region
      %75 = dma.done [#allocation6], 512
    $region37: #{tpu_custom_call.1} parent=1 // pred_fallthru
      _
    // Predicated region
    $region38: #{tpu_custom_call.1} parent=1 // pred_check
      _
    $region39: #{tpu_custom_call.1} parent=1 // pred_check_branch
      %77 = sbr.rel (0) target = $region41
    $region40: #{tpu_custom_call.1} parent=1 // pred_region
      %78 = dma.done [#allocation9], 512
    $region41: #{tpu_custom_call.1} parent=1 // pred_fallthru
      _
    %v79 = vld [vmem:[#allocation7] sm:$0xff]
    %v80 = vld [vmem:[#allocation7 + $0x8] sm:$0xff]
    %v81 = vld [vmem:[#allocation7 + $0x10] sm:$0xff]
    %v82 = vld [vmem:[#allocation7 + $0x18] sm:$0xff]
    %v83 = vld [vmem:[#allocation8] sm:$0xff]
    %v84 = vld [vmem:[#allocation8 + $0x8] sm:$0xff]
    %v85 = vld [vmem:[#allocation8 + $0x10] sm:$0xff]
    %v86 = vld [vmem:[#allocation8 + $0x18] sm:$0xff]
    %v87 = vld [vmem:[%s5] sm:$0x1]
    %v88 = vld [vmem:[#allocation2] sm:$0xff]
    %v89 = vld [vmem:[#allocation2 + $0x8] sm:$0xff]
    %v90 = vld [vmem:[#allocation5] sm:$0xff]
    %v91 = vld [vmem:[#allocation5 + $0x8] sm:$0xff]
    %v92 = vld [vmem:[#allocation5 + $0x10] sm:$0xff]
    %v93 = vld [vmem:[#allocation5 + $0x18] sm:$0xff]
    %v94 = vld [vmem:[%s3] sm:$0x1]
    %v96 = vlaneseq
    %v97 = vshrl.u32 %v96, 7
    %v98 = vsub.s32 0, %v97
    %v99 = vrot.slane %v94, %v98
    %vm101 = vcmask 261120
    %v103 = vsel %vm101, %v88, 0
    %v106 = vsel %vm101, %v89, 0
    %108 = vmatprep.subr.mxu0 0.0
    %109 = vmatpush1.msra.mxu0 0.0
    %110 = vmatprep.subr.mxu0 0.0
    %111 = vmatpush1.msra.mxu0 0.0
    %112 = vmatprep.subr.mxu0 0.0
    %113 = vmatpush1.msra.mxu0 0.0
    %114 = vmatprep.subr.mxu0 0.0
    %115 = vmatpush1.msra.mxu0 0.0
    %116 = vmatprep.subr.mxu0 0.0
    %117 = vmatpush1.msra.mxu0 0.0
    %118 = vmatprep.subr.mxu0 0.0
    %119 = vmatpush1.msra.mxu0 0.0
    %120 = vmatprep.subr.mxu0 0.0
    %121 = vmatpush1.msra.mxu0 0.0
    %122 = vmatprep.subr.mxu0 0.0
    %123 = vmatpush1.msra.mxu0 0.0
    %124 = vmatprep.subr.mxu0 0.0
    %125 = vmatpush1.msra.mxu0 0.0
    %126 = vmatprep.subr.mxu0 0.0
    %127 = vmatpush1.msra.mxu0 0.0
    %128 = vmatprep.subr.mxu0 0.0
    %129 = vmatpush1.msra.mxu0 0.0
    %130 = vmatprep.subr.mxu0 0.0
    %131 = vmatpush1.msra.mxu0 0.0
    %132 = vmatprep.subr.mxu0 0.0
    %133 = vmatpush1.msra.mxu0 %v93
    %134 = vmatprep.subr.mxu0 0.0
    %135 = vmatpush1.msra.mxu0 %v92
    %136 = vmatprep.subr.mxu0 0.0
    %137 = vmatpush1.msra.mxu0 %v91
    %138 = vmatprep.subr.mxu0 0.0
    %139 = vmatpush1.msra.mxu0 %v90
    %140 = vmatprep.subr.mxu0 0.0
    %141 = vmatpush2.msra.mxu0 0.0
    %142 = vmatprep.subr.mxu0 0.0
    %143 = vmatpush2.msra.mxu0 0.0
    %144 = vmatprep.subr.mxu0 0.0
    %145 = vmatpush2.msra.mxu0 0.0
    %146 = vmatprep.subr.mxu0 0.0
    %147 = vmatpush2.msra.mxu0 0.0
    %148 = vmatprep.subr.mxu0 0.0
    %149 = vmatpush2.msra.mxu0 0.0
    %150 = vmatprep.subr.mxu0 0.0
    %151 = vmatpush2.msra.mxu0 0.0
    %152 = vmatprep.subr.mxu0 0.0
    %153 = vmatpush2.msra.mxu0 0.0
    %154 = vmatprep.subr.mxu0 0.0
    %155 = vmatpush2.msra.mxu0 0.0
    %156 = vmatprep.subr.mxu0 0.0
    %157 = vmatpush2.msra.mxu0 0.0
    %158 = vmatprep.subr.mxu0 0.0
    %159 = vmatpush2.msra.mxu0 0.0
    %160 = vmatprep.subr.mxu0 0.0
    %161 = vmatpush2.msra.mxu0 0.0
    %162 = vmatprep.subr.mxu0 0.0
    %163 = vmatpush2.msra.mxu0 0.0
    %164 = vmatprep.subr.mxu0 0.0
    %165 = vmatpush2.msra.mxu0 0.0
    %166 = vmatprep.subr.mxu0 0.0
    %167 = vmatpush2.msra.mxu0 0.0
    %168 = vmatprep.subr.mxu0 0.0
    %169 = vmatpush2.msra.mxu0 0.0
    %170 = vmatprep.subr.mxu0 0.0
    %171 = vmatpush2.msra.mxu0 0.0
    %172 = vmatprep.mubr.f32.mxu0 0.0
    %173 = vmatmul.mubr.f32.gmra.mxu0 %v103
    %v174 = vpop.f32.mrf.mxu0
    %v175 = vadd.f32 %v99, %v174
    %v176 = vpop.f32.mrf.mxu0
    %177 = vmatprep.mubr.f32.mxu0 0.0
    %178 = vmatmul.mubr.f32.gmra.mxu0 %v106
    %v179 = vpop.f32.mrf.mxu0
    %v180 = vadd.f32 %v99, %v179
    %v181 = vpop.f32.mrf.mxu0
    %182 = vdwg.mxu0
    %v184 = vsel %vm101, 0.0, 0
    %186 = vmatprep.subr.mxu0 0.0
    %187 = vmatpush1.msra.mxu0 0.0
    %188 = vmatprep.subr.mxu0 0.0
    %189 = vmatpush1.msra.mxu0 0.0
    %190 = vmatprep.subr.mxu0 0.0
    %191 = vmatpush1.msra.mxu0 0.0
    %192 = vmatprep.subr.mxu0 0.0
    %193 = vmatpush1.msra.mxu0 0.0
    %194 = vmatprep.subr.mxu0 0.0
    %195 = vmatpush1.msra.mxu0 0.0
    %196 = vmatprep.subr.mxu0 0.0
    %197 = vmatpush1.msra.mxu0 0.0
    %198 = vmatprep.subr.mxu0 0.0
    %199 = vmatpush1.msra.mxu0 0.0
    %200 = vmatprep.subr.mxu0 0.0
    %201 = vmatpush1.msra.mxu0 0.0
    %202 = vmatprep.subr.mxu0 0.0
    %203 = vmatpush1.msra.mxu0 0.0
    %204 = vmatprep.subr.mxu0 0.0
    %205 = vmatpush1.msra.mxu0 0.0
    %206 = vmatprep.subr.mxu0 0.0
    %207 = vmatpush1.msra.mxu0 0.0
    %208 = vmatprep.subr.mxu0 0.0
    %209 = vmatpush1.msra.mxu0 0.0
    %210 = vmatprep.subr.mxu0 0.0
    %211 = vmatpush1.msra.mxu0 %v82
    %212 = vmatprep.subr.mxu0 0.0
    %213 = vmatpush1.msra.mxu0 %v81
    %214 = vmatprep.subr.mxu0 0.0
    %215 = vmatpush1.msra.mxu0 %v80
    %216 = vmatprep.subr.mxu0 0.0
    %217 = vmatpush1.msra.mxu0 %v79
    %218 = vmatprep.subr.mxu0 0.0
    %219 = vmatpush2.msra.mxu0 0.0
    %220 = vmatprep.subr.mxu0 0.0
    %221 = vmatpush2.msra.mxu0 0.0
    %222 = vmatprep.subr.mxu0 0.0
    %223 = vmatpush2.msra.mxu0 0.0
    %224 = vmatprep.subr.mxu0 0.0
    %225 = vmatpush2.msra.mxu0 0.0
    %226 = vmatprep.subr.mxu0 0.0
    %227 = vmatpush2.msra.mxu0 0.0
    %228 = vmatprep.subr.mxu0 0.0
    %229 = vmatpush2.msra.mxu0 0.0
    %230 = vmatprep.subr.mxu0 0.0
    %231 = vmatpush2.msra.mxu0 0.0
    %232 = vmatprep.subr.mxu0 0.0
    %233 = vmatpush2.msra.mxu0 0.0
    %234 = vmatprep.subr.mxu0 0.0
    %235 = vmatpush2.msra.mxu0 0.0
    %236 = vmatprep.subr.mxu0 0.0
    %237 = vmatpush2.msra.mxu0 0.0
    %238 = vmatprep.subr.mxu0 0.0
    %239 = vmatpush2.msra.mxu0 0.0
    %240 = vmatprep.subr.mxu0 0.0
    %241 = vmatpush2.msra.mxu0 0.0
    %242 = vmatprep.subr.mxu0 0.0
    %243 = vmatpush2.msra.mxu0 0.0
    %244 = vmatprep.subr.mxu0 0.0
    %245 = vmatpush2.msra.mxu0 0.0
    %246 = vmatprep.subr.mxu0 0.0
    %247 = vmatpush2.msra.mxu0 0.0
    %248 = vmatprep.subr.mxu0 0.0
    %249 = vmatpush2.msra.mxu0 0.0
    %250 = vmatprep.mubr.f32.mxu0 0.0
    %251 = vmatmul.mubr.f32.gmra.mxu0 %v184
    %v252 = vpop.f32.mrf.mxu0
    %v253 = vadd.f32 0.0, %v252
    %v254 = vpop.f32.mrf.mxu0
    %255 = vdwg.mxu0
    %v256 = vadd.f32 %v175, %v253
    %v257 = vxor.u32 %v256, 2147483648
    %v258 = vmul.f32 %v257, 1.442695
    %v259 = vpow.pop %v258
    %v260 = vadd.f32 %v259, 1.0
    %v261 = vrcp.pop %v260
    %v262 = vmul.f32 1.0, %v261
    %v263 = vtanh.pop %v256
    %v264 = vmul.f32 %v262, 0.0
    %266 = vrot.lane.b32.xlu0 %v263, 64
    %v267 = vpop.permute.xlu0 %266
    %v269 = vmul.f32 %v262, %v267
    %271 = vrot.lane.b32.xlu0 %v269, 32
    %v272 = vpop.permute.xlu0 %271
    %v274 = vadd.f32 %v264, %v272
    %v275 = vtanh.pop %v274
    %277 = vrot.lane.b32.xlu0 %v275, 64
    %v278 = vpop.permute.xlu0 %277
    %v280 = vmul.f32 %v262, %v278
    %282 = vrot.lane.b32.xlu0 %v280, 32
    %v283 = vpop.permute.xlu0 %282
    %v284 = vsel %vm101, %v283, 0
    %286 = vmatprep.subr.mxu0 0.0
    %287 = vmatpush1.msra.mxu0 0.0
    %288 = vmatprep.subr.mxu0 0.0
    %289 = vmatpush1.msra.mxu0 0.0
    %290 = vmatprep.subr.mxu0 0.0
    %291 = vmatpush1.msra.mxu0 0.0
    %292 = vmatprep.subr.mxu0 0.0
    %293 = vmatpush1.msra.mxu0 0.0
    %294 = vmatprep.subr.mxu0 0.0
    %295 = vmatpush1.msra.mxu0 0.0
    %296 = vmatprep.subr.mxu0 0.0
    %297 = vmatpush1.msra.mxu0 0.0
    %298 = vmatprep.subr.mxu0 0.0
    %299 = vmatpush1.msra.mxu0 0.0
    %300 = vmatprep.subr.mxu0 0.0
    %301 = vmatpush1.msra.mxu0 0.0
    %302 = vmatprep.subr.mxu0 0.0
    %303 = vmatpush1.msra.mxu0 0.0
    %304 = vmatprep.subr.mxu0 0.0
    %305 = vmatpush1.msra.mxu0 0.0
    %306 = vmatprep.subr.mxu0 0.0
    %307 = vmatpush1.msra.mxu0 0.0
    %308 = vmatprep.subr.mxu0 0.0
    %309 = vmatpush1.msra.mxu0 0.0
    %310 = vmatprep.subr.mxu0 0.0
    %311 = vmatpush1.msra.mxu0 %v82
    %312 = vmatprep.subr.mxu0 0.0
    %313 = vmatpush1.msra.mxu0 %v81
    %314 = vmatprep.subr.mxu0 0.0
    %315 = vmatpush1.msra.mxu0 %v80
    %316 = vmatprep.subr.mxu0 0.0
    %317 = vmatpush1.msra.mxu0 %v79
    %318 = vmatprep.subr.mxu0 0.0
    %319 = vmatpush2.msra.mxu0 0.0
    %320 = vmatprep.subr.mxu0 0.0
    %321 = vmatpush2.msra.mxu0 0.0
    %322 = vmatprep.subr.mxu0 0.0
    %323 = vmatpush2.msra.mxu0 0.0
    %324 = vmatprep.subr.mxu0 0.0
    %325 = vmatpush2.msra.mxu0 0.0
    %326 = vmatprep.subr.mxu0 0.0
    %327 = vmatpush2.msra.mxu0 0.0
    %328 = vmatprep.subr.mxu0 0.0
    %329 = vmatpush2.msra.mxu0 0.0
    %330 = vmatprep.subr.mxu0 0.0
    %331 = vmatpush2.msra.mxu0 0.0
    %332 = vmatprep.subr.mxu0 0.0
    %333 = vmatpush2.msra.mxu0 0.0
    %334 = vmatprep.subr.mxu0 0.0
    %335 = vmatpush2.msra.mxu0 0.0
    %336 = vmatprep.subr.mxu0 0.0
    %337 = vmatpush2.msra.mxu0 0.0
    %338 = vmatprep.subr.mxu0 0.0
    %339 = vmatpush2.msra.mxu0 0.0
    %340 = vmatprep.subr.mxu0 0.0
    %341 = vmatpush2.msra.mxu0 0.0
    %342 = vmatprep.subr.mxu0 0.0
    %343 = vmatpush2.msra.mxu0 0.0
    %344 = vmatprep.subr.mxu0 0.0
    %345 = vmatpush2.msra.mxu0 0.0
    %346 = vmatprep.subr.mxu0 0.0
    %347 = vmatpush2.msra.mxu0 0.0
    %348 = vmatprep.subr.mxu0 0.0
    %349 = vmatpush2.msra.mxu0 0.0
    %350 = vmatprep.mubr.f32.mxu0 0.0
    %351 = vmatmul.mubr.f32.gmra.mxu0 %v284
    %v352 = vpop.f32.mrf.mxu0
    %v353 = vadd.f32 0.0, %v352
    %v354 = vpop.f32.mrf.mxu0
    %355 = vdwg.mxu0
    %v357 = vrot.slane %v353, 6
    %v359 = vadd.f32 %v175, %v357
    %v360 = vxor.u32 %v359, 2147483648
    %v361 = vmul.f32 %v360, 1.442695
    %v362 = vpow.pop %v361
    %v363 = vadd.f32 %v362, 1.0
    %v364 = vrcp.pop %v363
    %v365 = vmul.f32 1.0, %v364
    %v366 = vtanh.pop %v359
    %v368 = vrot.slane %v274, 6
    %v370 = vmul.f32 %v365, %v368
    %372 = vrot.lane.b32.xlu0 %v366, 64
    %v373 = vpop.permute.xlu0 %372
    %v375 = vmul.f32 %v365, %v373
    %377 = vrot.lane.b32.xlu0 %v375, 32
    %v378 = vpop.permute.xlu0 %377
    %v380 = vadd.f32 %v370, %v378
    %v381 = vtanh.pop %v380
    %383 = vrot.lane.b32.xlu0 %v381, 64
    %v384 = vpop.permute.xlu0 %383
    %v386 = vmul.f32 %v365, %v384
    %v388 = vrot.slane %v386, 2
    %389 = vrot.lane.b32.xlu0 %v388, 32
    %v390 = vpop.permute.xlu0 %389
    %v391 = vsel %vm101, %v390, 0
    %393 = vmatprep.subr.mxu0 0.0
    %394 = vmatpush1.msra.mxu0 0.0
    %395 = vmatprep.subr.mxu0 0.0
    %396 = vmatpush1.msra.mxu0 0.0
    %397 = vmatprep.subr.mxu0 0.0
    %398 = vmatpush1.msra.mxu0 0.0
    %399 = vmatprep.subr.mxu0 0.0
    %400 = vmatpush1.msra.mxu0 0.0
    %401 = vmatprep.subr.mxu0 0.0
    %402 = vmatpush1.msra.mxu0 0.0
    %403 = vmatprep.subr.mxu0 0.0
    %404 = vmatpush1.msra.mxu0 0.0
    %405 = vmatprep.subr.mxu0 0.0
    %406 = vmatpush1.msra.mxu0 0.0
    %407 = vmatprep.subr.mxu0 0.0
    %408 = vmatpush1.msra.mxu0 0.0
    %409 = vmatprep.subr.mxu0 0.0
    %410 = vmatpush1.msra.mxu0 0.0
    %411 = vmatprep.subr.mxu0 0.0
    %412 = vmatpush1.msra.mxu0 0.0
    %413 = vmatprep.subr.mxu0 0.0
    %414 = vmatpush1.msra.mxu0 0.0
    %415 = vmatprep.subr.mxu0 0.0
    %416 = vmatpush1.msra.mxu0 0.0
    %417 = vmatprep.subr.mxu0 0.0
    %418 = vmatpush1.msra.mxu0 %v82
    %419 = vmatprep.subr.mxu0 0.0
    %420 = vmatpush1.msra.mxu0 %v81
    %421 = vmatprep.subr.mxu0 0.0
    %422 = vmatpush1.msra.mxu0 %v80
    %423 = vmatprep.subr.mxu0 0.0
    %424 = vmatpush1.msra.mxu0 %v79
    %425 = vmatprep.subr.mxu0 0.0
    %426 = vmatpush2.msra.mxu0 0.0
    %427 = vmatprep.subr.mxu0 0.0
    %428 = vmatpush2.msra.mxu0 0.0
    %429 = vmatprep.subr.mxu0 0.0
    %430 = vmatpush2.msra.mxu0 0.0
    %431 = vmatprep.subr.mxu0 0.0
    %432 = vmatpush2.msra.mxu0 0.0
    %433 = vmatprep.subr.mxu0 0.0
    %434 = vmatpush2.msra.mxu0 0.0
    %435 = vmatprep.subr.mxu0 0.0
    %436 = vmatpush2.msra.mxu0 0.0
    %437 = vmatprep.subr.mxu0 0.0
    %438 = vmatpush2.msra.mxu0 0.0
    %439 = vmatprep.subr.mxu0 0.0
    %440 = vmatpush2.msra.mxu0 0.0
    %441 = vmatprep.subr.mxu0 0.0
    %442 = vmatpush2.msra.mxu0 0.0
    %443 = vmatprep.subr.mxu0 0.0
    %444 = vmatpush2.msra.mxu0 0.0
    %445 = vmatprep.subr.mxu0 0.0
    %446 = vmatpush2.msra.mxu0 0.0
    %447 = vmatprep.subr.mxu0 0.0
    %448 = vmatpush2.msra.mxu0 0.0
    %449 = vmatprep.subr.mxu0 0.0
    %450 = vmatpush2.msra.mxu0 0.0
    %451 = vmatprep.subr.mxu0 0.0
    %452 = vmatpush2.msra.mxu0 0.0
    %453 = vmatprep.subr.mxu0 0.0
    %454 = vmatpush2.msra.mxu0 0.0
    %455 = vmatprep.subr.mxu0 0.0
    %456 = vmatpush2.msra.mxu0 0.0
    %457 = vmatprep.mubr.f32.mxu0 0.0
    %458 = vmatmul.mubr.f32.gmra.mxu0 %v391
    %v459 = vpop.f32.mrf.mxu0
    %v460 = vadd.f32 0.0, %v459
    %v461 = vpop.f32.mrf.mxu0
    %462 = vdwg.mxu0
    %v464 = vrot.slane %v460, 4
    %v466 = vadd.f32 %v175, %v464
    %v467 = vxor.u32 %v466, 2147483648
    %v468 = vmul.f32 %v467, 1.442695
    %v469 = vpow.pop %v468
    %v470 = vadd.f32 %v469, 1.0
    %v471 = vrcp.pop %v470
    %v472 = vmul.f32 1.0, %v471
    %v473 = vtanh.pop %v466
    %v475 = vrot.slane %v380, 6
    %v477 = vmul.f32 %v472, %v475
    %479 = vrot.lane.b32.xlu0 %v473, 64
    %v480 = vpop.permute.xlu0 %479
    %v482 = vmul.f32 %v472, %v480
    %484 = vrot.lane.b32.xlu0 %v482, 32
    %v485 = vpop.permute.xlu0 %484
    %v487 = vadd.f32 %v477, %v485
    %v488 = vtanh.pop %v487
    %490 = vrot.lane.b32.xlu0 %v488, 64
    %v491 = vpop.permute.xlu0 %490
    %v493 = vmul.f32 %v472, %v491
    %v495 = vrot.slane %v493, 4
    %496 = vrot.lane.b32.xlu0 %v495, 32
    %v497 = vpop.permute.xlu0 %496
    %v498 = vsel %vm101, %v497, 0
    %500 = vmatprep.subr.mxu0 0.0
    %501 = vmatpush1.msra.mxu0 0.0
    %502 = vmatprep.subr.mxu0 0.0
    %503 = vmatpush1.msra.mxu0 0.0
    %504 = vmatprep.subr.mxu0 0.0
    %505 = vmatpush1.msra.mxu0 0.0
    %506 = vmatprep.subr.mxu0 0.0
    %507 = vmatpush1.msra.mxu0 0.0
    %508 = vmatprep.subr.mxu0 0.0
    %509 = vmatpush1.msra.mxu0 0.0
    %510 = vmatprep.subr.mxu0 0.0
    %511 = vmatpush1.msra.mxu0 0.0
    %512 = vmatprep.subr.mxu0 0.0
    %513 = vmatpush1.msra.mxu0 0.0
    %514 = vmatprep.subr.mxu0 0.0
    %515 = vmatpush1.msra.mxu0 0.0
    %516 = vmatprep.subr.mxu0 0.0
    %517 = vmatpush1.msra.mxu0 0.0
    %518 = vmatprep.subr.mxu0 0.0
    %519 = vmatpush1.msra.mxu0 0.0
    %520 = vmatprep.subr.mxu0 0.0
    %521 = vmatpush1.msra.mxu0 0.0
    %522 = vmatprep.subr.mxu0 0.0
    %523 = vmatpush1.msra.mxu0 0.0
    %524 = vmatprep.subr.mxu0 0.0
    %525 = vmatpush1.msra.mxu0 %v82
    %526 = vmatprep.subr.mxu0 0.0
    %527 = vmatpush1.msra.mxu0 %v81
    %528 = vmatprep.subr.mxu0 0.0
    %529 = vmatpush1.msra.mxu0 %v80
    %530 = vmatprep.subr.mxu0 0.0
    %531 = vmatpush1.msra.mxu0 %v79
    %532 = vmatprep.subr.mxu0 0.0
    %533 = vmatpush2.msra.mxu0 0.0
    %534 = vmatprep.subr.mxu0 0.0
    %535 = vmatpush2.msra.mxu0 0.0
    %536 = vmatprep.subr.mxu0 0.0
    %537 = vmatpush2.msra.mxu0 0.0
    %538 = vmatprep.subr.mxu0 0.0
    %539 = vmatpush2.msra.mxu0 0.0
    %540 = vmatprep.subr.mxu0 0.0
    %541 = vmatpush2.msra.mxu0 0.0
    %542 = vmatprep.subr.mxu0 0.0
    %543 = vmatpush2.msra.mxu0 0.0
    %544 = vmatprep.subr.mxu0 0.0
    %545 = vmatpush2.msra.mxu0 0.0
    %546 = vmatprep.subr.mxu0 0.0
    %547 = vmatpush2.msra.mxu0 0.0
    %548 = vmatprep.subr.mxu0 0.0
    %549 = vmatpush2.msra.mxu0 0.0
    %550 = vmatprep.subr.mxu0 0.0
    %551 = vmatpush2.msra.mxu0 0.0
    %552 = vmatprep.subr.mxu0 0.0
    %553 = vmatpush2.msra.mxu0 0.0
    %554 = vmatprep.subr.mxu0 0.0
    %555 = vmatpush2.msra.mxu0 0.0
    %556 = vmatprep.subr.mxu0 0.0
    %557 = vmatpush2.msra.mxu0 0.0
    %558 = vmatprep.subr.mxu0 0.0
    %559 = vmatpush2.msra.mxu0 0.0
    %560 = vmatprep.subr.mxu0 0.0
    %561 = vmatpush2.msra.mxu0 0.0
    %562 = vmatprep.subr.mxu0 0.0
    %563 = vmatpush2.msra.mxu0 0.0
    %564 = vmatprep.mubr.f32.mxu0 0.0
    %565 = vmatmul.mubr.f32.gmra.mxu0 %v498
    %v566 = vpop.f32.mrf.mxu0
    %v567 = vadd.f32 0.0, %v566
    %v568 = vpop.f32.mrf.mxu0
    %569 = vdwg.mxu0
    %v571 = vrot.slane %v567, 2
    %v573 = vadd.f32 %v175, %v571
    %v574 = vxor.u32 %v573, 2147483648
    %v575 = vmul.f32 %v574, 1.442695
    %v576 = vpow.pop %v575
    %v577 = vadd.f32 %v576, 1.0
    %v578 = vrcp.pop %v577
    %v579 = vmul.f32 1.0, %v578
    %v580 = vtanh.pop %v573
    %v582 = vrot.slane %v487, 6
    %v584 = vmul.f32 %v579, %v582
    %586 = vrot.lane.b32.xlu0 %v580, 64
    %v587 = vpop.permute.xlu0 %586
    %v589 = vmul.f32 %v579, %v587
    %591 = vrot.lane.b32.xlu0 %v589, 32
    %v592 = vpop.permute.xlu0 %591
    %v594 = vadd.f32 %v584, %v592
    %v595 = vtanh.pop %v594
    %597 = vrot.lane.b32.xlu0 %v595, 64
    %v598 = vpop.permute.xlu0 %597
    %v600 = vmul.f32 %v579, %v598
    %v602 = vrot.slane %v600, 6
    %603 = vrot.lane.b32.xlu0 %v602, 32
    %v604 = vpop.permute.xlu0 %603
    %v605 = vsel %vm101, %v604, 0
    %607 = vmatprep.subr.mxu0 0.0
    %608 = vmatpush1.msra.mxu0 0.0
    %609 = vmatprep.subr.mxu0 0.0
    %610 = vmatpush1.msra.mxu0 0.0
    %611 = vmatprep.subr.mxu0 0.0
    %612 = vmatpush1.msra.mxu0 0.0
    %613 = vmatprep.subr.mxu0 0.0
    %614 = vmatpush1.msra.mxu0 0.0
    %615 = vmatprep.subr.mxu0 0.0
    %616 = vmatpush1.msra.mxu0 0.0
    %617 = vmatprep.subr.mxu0 0.0
    %618 = vmatpush1.msra.mxu0 0.0
    %619 = vmatprep.subr.mxu0 0.0
    %620 = vmatpush1.msra.mxu0 0.0
    %621 = vmatprep.subr.mxu0 0.0
    %622 = vmatpush1.msra.mxu0 0.0
    %623 = vmatprep.subr.mxu0 0.0
    %624 = vmatpush1.msra.mxu0 0.0
    %625 = vmatprep.subr.mxu0 0.0
    %626 = vmatpush1.msra.mxu0 0.0
    %627 = vmatprep.subr.mxu0 0.0
    %628 = vmatpush1.msra.mxu0 0.0
    %629 = vmatprep.subr.mxu0 0.0
    %630 = vmatpush1.msra.mxu0 0.0
    %631 = vmatprep.subr.mxu0 0.0
    %632 = vmatpush1.msra.mxu0 %v82
    %633 = vmatprep.subr.mxu0 0.0
    %634 = vmatpush1.msra.mxu0 %v81
    %635 = vmatprep.subr.mxu0 0.0
    %636 = vmatpush1.msra.mxu0 %v80
    %637 = vmatprep.subr.mxu0 0.0
    %638 = vmatpush1.msra.mxu0 %v79
    %639 = vmatprep.subr.mxu0 0.0
    %640 = vmatpush2.msra.mxu0 0.0
    %641 = vmatprep.subr.mxu0 0.0
    %642 = vmatpush2.msra.mxu0 0.0
    %643 = vmatprep.subr.mxu0 0.0
    %644 = vmatpush2.msra.mxu0 0.0
    %645 = vmatprep.subr.mxu0 0.0
    %646 = vmatpush2.msra.mxu0 0.0
    %647 = vmatprep.subr.mxu0 0.0
    %648 = vmatpush2.msra.mxu0 0.0
    %649 = vmatprep.subr.mxu0 0.0
    %650 = vmatpush2.msra.mxu0 0.0
    %651 = vmatprep.subr.mxu0 0.0
    %652 = vmatpush2.msra.mxu0 0.0
    %653 = vmatprep.subr.mxu0 0.0
    %654 = vmatpush2.msra.mxu0 0.0
    %655 = vmatprep.subr.mxu0 0.0
    %656 = vmatpush2.msra.mxu0 0.0
    %657 = vmatprep.subr.mxu0 0.0
    %658 = vmatpush2.msra.mxu0 0.0
    %659 = vmatprep.subr.mxu0 0.0
    %660 = vmatpush2.msra.mxu0 0.0
    %661 = vmatprep.subr.mxu0 0.0
    %662 = vmatpush2.msra.mxu0 0.0
    %663 = vmatprep.subr.mxu0 0.0
    %664 = vmatpush2.msra.mxu0 0.0
    %665 = vmatprep.subr.mxu0 0.0
    %666 = vmatpush2.msra.mxu0 0.0
    %667 = vmatprep.subr.mxu0 0.0
    %668 = vmatpush2.msra.mxu0 0.0
    %669 = vmatprep.subr.mxu0 0.0
    %670 = vmatpush2.msra.mxu0 0.0
    %671 = vmatprep.mubr.f32.mxu0 0.0
    %672 = vmatmul.mubr.f32.gmra.mxu0 %v605
    %v673 = vpop.f32.mrf.mxu0
    %v674 = vadd.f32 0.0, %v673
    %v675 = vpop.f32.mrf.mxu0
    %676 = vdwg.mxu0
    %v677 = vadd.f32 %v180, %v674
    %v678 = vxor.u32 %v677, 2147483648
    %v679 = vmul.f32 %v678, 1.442695
    %v680 = vpow.pop %v679
    %v681 = vadd.f32 %v680, 1.0
    %v682 = vrcp.pop %v681
    %v683 = vmul.f32 1.0, %v682
    %v684 = vtanh.pop %v677
    %v686 = vrot.slane %v594, 6
    %v688 = vmul.f32 %v683, %v686
    %690 = vrot.lane.b32.xlu0 %v684, 64
    %v691 = vpop.permute.xlu0 %690
    %v693 = vmul.f32 %v683, %v691
    %695 = vrot.lane.b32.xlu0 %v693, 32
    %v696 = vpop.permute.xlu0 %695
    %v698 = vadd.f32 %v688, %v696
    %v699 = vtanh.pop %v698
    %701 = vrot.lane.b32.xlu0 %v699, 64
    %v702 = vpop.permute.xlu0 %701
    %v704 = vmul.f32 %v683, %v702
    %706 = vrot.lane.b32.xlu0 %v704, 32
    %v707 = vpop.permute.xlu0 %706
    %v708 = vsel %vm101, %v707, 0
    %710 = vmatprep.subr.mxu0 0.0
    %711 = vmatpush1.msra.mxu0 0.0
    %712 = vmatprep.subr.mxu0 0.0
    %713 = vmatpush1.msra.mxu0 0.0
    %714 = vmatprep.subr.mxu0 0.0
    %715 = vmatpush1.msra.mxu0 0.0
    %716 = vmatprep.subr.mxu0 0.0
    %717 = vmatpush1.msra.mxu0 0.0
    %718 = vmatprep.subr.mxu0 0.0
    %719 = vmatpush1.msra.mxu0 0.0
    %720 = vmatprep.subr.mxu0 0.0
    %721 = vmatpush1.msra.mxu0 0.0
    %722 = vmatprep.subr.mxu0 0.0
    %723 = vmatpush1.msra.mxu0 0.0
    %724 = vmatprep.subr.mxu0 0.0
    %725 = vmatpush1.msra.mxu0 0.0
    %726 = vmatprep.subr.mxu0 0.0
    %727 = vmatpush1.msra.mxu0 0.0
    %728 = vmatprep.subr.mxu0 0.0
    %729 = vmatpush1.msra.mxu0 0.0
    %730 = vmatprep.subr.mxu0 0.0
    %731 = vmatpush1.msra.mxu0 0.0
    %732 = vmatprep.subr.mxu0 0.0
    %733 = vmatpush1.msra.mxu0 0.0
    %734 = vmatprep.subr.mxu0 0.0
    %735 = vmatpush1.msra.mxu0 %v82
    %736 = vmatprep.subr.mxu0 0.0
    %737 = vmatpush1.msra.mxu0 %v81
    %738 = vmatprep.subr.mxu0 0.0
    %739 = vmatpush1.msra.mxu0 %v80
    %740 = vmatprep.subr.mxu0 0.0
    %741 = vmatpush1.msra.mxu0 %v79
    %742 = vmatprep.subr.mxu0 0.0
    %743 = vmatpush2.msra.mxu0 0.0
    %744 = vmatprep.subr.mxu0 0.0
    %745 = vmatpush2.msra.mxu0 0.0
    %746 = vmatprep.subr.mxu0 0.0
    %747 = vmatpush2.msra.mxu0 0.0
    %748 = vmatprep.subr.mxu0 0.0
    %749 = vmatpush2.msra.mxu0 0.0
    %750 = vmatprep.subr.mxu0 0.0
    %751 = vmatpush2.msra.mxu0 0.0
    %752 = vmatprep.subr.mxu0 0.0
    %753 = vmatpush2.msra.mxu0 0.0
    %754 = vmatprep.subr.mxu0 0.0
    %755 = vmatpush2.msra.mxu0 0.0
    %756 = vmatprep.subr.mxu0 0.0
    %757 = vmatpush2.msra.mxu0 0.0
    %758 = vmatprep.subr.mxu0 0.0
    %759 = vmatpush2.msra.mxu0 0.0
    %760 = vmatprep.subr.mxu0 0.0
    %761 = vmatpush2.msra.mxu0 0.0
    %762 = vmatprep.subr.mxu0 0.0
    %763 = vmatpush2.msra.mxu0 0.0
    %764 = vmatprep.subr.mxu0 0.0
    %765 = vmatpush2.msra.mxu0 0.0
    %766 = vmatprep.subr.mxu0 0.0
    %767 = vmatpush2.msra.mxu0 0.0
    %768 = vmatprep.subr.mxu0 0.0
    %769 = vmatpush2.msra.mxu0 0.0
    %770 = vmatprep.subr.mxu0 0.0
    %771 = vmatpush2.msra.mxu0 0.0
    %772 = vmatprep.subr.mxu0 0.0
    %773 = vmatpush2.msra.mxu0 0.0
    %774 = vmatprep.mubr.f32.mxu0 0.0
    %775 = vmatmul.mubr.f32.gmra.mxu0 %v708
    %v776 = vpop.f32.mrf.mxu0
    %v777 = vadd.f32 0.0, %v776
    %v778 = vpop.f32.mrf.mxu0
    %779 = vdwg.mxu0
    %v781 = vrot.slane %v777, 6
    %v783 = vadd.f32 %v180, %v781
    %v784 = vxor.u32 %v783, 2147483648
    %v785 = vmul.f32 %v784, 1.442695
    %v786 = vpow.pop %v785
    %v787 = vadd.f32 %v786, 1.0
    %v788 = vrcp.pop %v787
    %v789 = vmul.f32 1.0, %v788
    %v790 = vtanh.pop %v783
    %v792 = vrot.slane %v698, 6
    %v794 = vmul.f32 %v789, %v792
    %796 = vrot.lane.b32.xlu0 %v790, 64
    %v797 = vpop.permute.xlu0 %796
    %v799 = vmul.f32 %v789, %v797
    %801 = vrot.lane.b32.xlu0 %v799, 32
    %v802 = vpop.permute.xlu0 %801
    %v804 = vadd.f32 %v794, %v802
    %v805 = vtanh.pop %v804
    %807 = vrot.lane.b32.xlu0 %v805, 64
    %v808 = vpop.permute.xlu0 %807
    %v810 = vmul.f32 %v789, %v808
    %v812 = vrot.slane %v810, 2
    %813 = vrot.lane.b32.xlu0 %v812, 32
    %v814 = vpop.permute.xlu0 %813
    %v815 = vsel %vm101, %v814, 0
    %817 = vmatprep.subr.mxu0 0.0
    %818 = vmatpush1.msra.mxu0 0.0
    %819 = vmatprep.subr.mxu0 0.0
    %820 = vmatpush1.msra.mxu0 0.0
    %821 = vmatprep.subr.mxu0 0.0
    %822 = vmatpush1.msra.mxu0 0.0
    %823 = vmatprep.subr.mxu0 0.0
    %824 = vmatpush1.msra.mxu0 0.0
    %825 = vmatprep.subr.mxu0 0.0
    %826 = vmatpush1.msra.mxu0 0.0
    %827 = vmatprep.subr.mxu0 0.0
    %828 = vmatpush1.msra.mxu0 0.0
    %829 = vmatprep.subr.mxu0 0.0
    %830 = vmatpush1.msra.mxu0 0.0
    %831 = vmatprep.subr.mxu0 0.0
    %832 = vmatpush1.msra.mxu0 0.0
    %833 = vmatprep.subr.mxu0 0.0
    %834 = vmatpush1.msra.mxu0 0.0
    %835 = vmatprep.subr.mxu0 0.0
    %836 = vmatpush1.msra.mxu0 0.0
    %837 = vmatprep.subr.mxu0 0.0
    %838 = vmatpush1.msra.mxu0 0.0
    %839 = vmatprep.subr.mxu0 0.0
    %840 = vmatpush1.msra.mxu0 0.0
    %841 = vmatprep.subr.mxu0 0.0
    %842 = vmatpush1.msra.mxu0 %v82
    %843 = vmatprep.subr.mxu0 0.0
    %844 = vmatpush1.msra.mxu0 %v81
    %845 = vmatprep.subr.mxu0 0.0
    %846 = vmatpush1.msra.mxu0 %v80
    %847 = vmatprep.subr.mxu0 0.0
    %848 = vmatpush1.msra.mxu0 %v79
    %849 = vmatprep.subr.mxu0 0.0
    %850 = vmatpush2.msra.mxu0 0.0
    %851 = vmatprep.subr.mxu0 0.0
    %852 = vmatpush2.msra.mxu0 0.0
    %853 = vmatprep.subr.mxu0 0.0
    %854 = vmatpush2.msra.mxu0 0.0
    %855 = vmatprep.subr.mxu0 0.0
    %856 = vmatpush2.msra.mxu0 0.0
    %857 = vmatprep.subr.mxu0 0.0
    %858 = vmatpush2.msra.mxu0 0.0
    %859 = vmatprep.subr.mxu0 0.0
    %860 = vmatpush2.msra.mxu0 0.0
    %861 = vmatprep.subr.mxu0 0.0
    %862 = vmatpush2.msra.mxu0 0.0
    %863 = vmatprep.subr.mxu0 0.0
    %864 = vmatpush2.msra.mxu0 0.0
    %865 = vmatprep.subr.mxu0 0.0
    %866 = vmatpush2.msra.mxu0 0.0
    %867 = vmatprep.subr.mxu0 0.0
    %868 = vmatpush2.msra.mxu0 0.0
    %869 = vmatprep.subr.mxu0 0.0
    %870 = vmatpush2.msra.mxu0 0.0
    %871 = vmatprep.subr.mxu0 0.0
    %872 = vmatpush2.msra.mxu0 0.0
    %873 = vmatprep.subr.mxu0 0.0
    %874 = vmatpush2.msra.mxu0 0.0
    %875 = vmatprep.subr.mxu0 0.0
    %876 = vmatpush2.msra.mxu0 0.0
    %877 = vmatprep.subr.mxu0 0.0
    %878 = vmatpush2.msra.mxu0 0.0
    %879 = vmatprep.subr.mxu0 0.0
    %880 = vmatpush2.msra.mxu0 0.0
    %881 = vmatprep.mubr.f32.mxu0 0.0
    %882 = vmatmul.mubr.f32.gmra.mxu0 %v815
    %v883 = vpop.f32.mrf.mxu0
    %v884 = vadd.f32 0.0, %v883
    %v885 = vpop.f32.mrf.mxu0
    %886 = vdwg.mxu0
    %v888 = vrot.slane %v884, 4
    %v890 = vadd.f32 %v180, %v888
    %v891 = vxor.u32 %v890, 2147483648
    %v892 = vmul.f32 %v891, 1.442695
    %v893 = vpow.pop %v892
    %v894 = vadd.f32 %v893, 1.0
    %v895 = vrcp.pop %v894
    %v896 = vmul.f32 1.0, %v895
    %v897 = vtanh.pop %v890
    %v899 = vrot.slane %v804, 6
    %v901 = vmul.f32 %v896, %v899
    %903 = vrot.lane.b32.xlu0 %v897, 64
    %v904 = vpop.permute.xlu0 %903
    %v906 = vmul.f32 %v896, %v904
    %908 = vrot.lane.b32.xlu0 %v906, 32
    %v909 = vpop.permute.xlu0 %908
    %v911 = vadd.f32 %v901, %v909
    %v912 = vtanh.pop %v911
    %914 = vrot.lane.b32.xlu0 %v912, 64
    %v915 = vpop.permute.xlu0 %914
    %v917 = vmul.f32 %v896, %v915
    %v919 = vrot.slane %v917, 4
    %920 = vrot.lane.b32.xlu0 %v919, 32
    %v921 = vpop.permute.xlu0 %920
    %v922 = vsel %vm101, %v921, 0
    %924 = vmatprep.subr.mxu0 0.0
    %925 = vmatpush1.msra.mxu0 0.0
    %926 = vmatprep.subr.mxu0 0.0
    %927 = vmatpush1.msra.mxu0 0.0
    %928 = vmatprep.subr.mxu0 0.0
    %929 = vmatpush1.msra.mxu0 0.0
    %930 = vmatprep.subr.mxu0 0.0
    %931 = vmatpush1.msra.mxu0 0.0
    %932 = vmatprep.subr.mxu0 0.0
    %933 = vmatpush1.msra.mxu0 0.0
    %934 = vmatprep.subr.mxu0 0.0
    %935 = vmatpush1.msra.mxu0 0.0
    %936 = vmatprep.subr.mxu0 0.0
    %937 = vmatpush1.msra.mxu0 0.0
    %938 = vmatprep.subr.mxu0 0.0
    %939 = vmatpush1.msra.mxu0 0.0
    %940 = vmatprep.subr.mxu0 0.0
    %941 = vmatpush1.msra.mxu0 0.0
    %942 = vmatprep.subr.mxu0 0.0
    %943 = vmatpush1.msra.mxu0 0.0
    %944 = vmatprep.subr.mxu0 0.0
    %945 = vmatpush1.msra.mxu0 0.0
    %946 = vmatprep.subr.mxu0 0.0
    %947 = vmatpush1.msra.mxu0 0.0
    %948 = vmatprep.subr.mxu0 0.0
    %949 = vmatpush1.msra.mxu0 %v82
    %950 = vmatprep.subr.mxu0 0.0
    %951 = vmatpush1.msra.mxu0 %v81
    %952 = vmatprep.subr.mxu0 0.0
    %953 = vmatpush1.msra.mxu0 %v80
    %954 = vmatprep.subr.mxu0 0.0
    %955 = vmatpush1.msra.mxu0 %v79
    %956 = vmatprep.subr.mxu0 0.0
    %957 = vmatpush2.msra.mxu0 0.0
    %958 = vmatprep.subr.mxu0 0.0
    %959 = vmatpush2.msra.mxu0 0.0
    %960 = vmatprep.subr.mxu0 0.0
    %961 = vmatpush2.msra.mxu0 0.0
    %962 = vmatprep.subr.mxu0 0.0
    %963 = vmatpush2.msra.mxu0 0.0
    %964 = vmatprep.subr.mxu0 0.0
    %965 = vmatpush2.msra.mxu0 0.0
    %966 = vmatprep.subr.mxu0 0.0
    %967 = vmatpush2.msra.mxu0 0.0
    %968 = vmatprep.subr.mxu0 0.0
    %969 = vmatpush2.msra.mxu0 0.0
    %970 = vmatprep.subr.mxu0 0.0
    %971 = vmatpush2.msra.mxu0 0.0
    %972 = vmatprep.subr.mxu0 0.0
    %973 = vmatpush2.msra.mxu0 0.0
    %974 = vmatprep.subr.mxu0 0.0
    %975 = vmatpush2.msra.mxu0 0.0
    %976 = vmatprep.subr.mxu0 0.0
    %977 = vmatpush2.msra.mxu0 0.0
    %978 = vmatprep.subr.mxu0 0.0
    %979 = vmatpush2.msra.mxu0 0.0
    %980 = vmatprep.subr.mxu0 0.0
    %981 = vmatpush2.msra.mxu0 0.0
    %982 = vmatprep.subr.mxu0 0.0
    %983 = vmatpush2.msra.mxu0 0.0
    %984 = vmatprep.subr.mxu0 0.0
    %985 = vmatpush2.msra.mxu0 0.0
    %986 = vmatprep.subr.mxu0 0.0
    %987 = vmatpush2.msra.mxu0 0.0
    %988 = vmatprep.mubr.f32.mxu0 0.0
    %989 = vmatmul.mubr.f32.gmra.mxu0 %v922
    %v990 = vpop.f32.mrf.mxu0
    %v991 = vadd.f32 0.0, %v990
    %v992 = vpop.f32.mrf.mxu0
    %993 = vdwg.mxu0
    %v995 = vrot.slane %v991, 2
    %v997 = vadd.f32 %v180, %v995
    %v998 = vxor.u32 %v997, 2147483648
    %v999 = vmul.f32 %v998, 1.442695
    %v1000 = vpow.pop %v999
    %v1001 = vadd.f32 %v1000, 1.0
    %v1002 = vrcp.pop %v1001
    %v1003 = vmul.f32 1.0, %v1002
    %v1004 = vtanh.pop %v997
    %v1006 = vrot.slane %v911, 6
    %v1008 = vmul.f32 %v1003, %v1006
    %1010 = vrot.lane.b32.xlu0 %v1004, 64
    %v1011 = vpop.permute.xlu0 %1010
    %v1013 = vmul.f32 %v1003, %v1011
    %1015 = vrot.lane.b32.xlu0 %v1013, 32
    %v1016 = vpop.permute.xlu0 %1015
    %v1018 = vadd.f32 %v1008, %v1016
    %v1019 = vtanh.pop %v1018
    %1021 = vrot.lane.b32.xlu0 %v1019, 64
    %v1022 = vpop.permute.xlu0 %1021
    %v1024 = vmul.f32 %v1003, %v1022
    %v1025 = vlaneseq
    %v1026 = vshrl.u32 %v1025, 7
    %vm1027 = vcmp.eq.s32.totalorder %v1026, 0
    %v1028 = vlaneseq
    %v1029 = vshrl.u32 %v1028, 7
    %v1030 = vsub.s32 0, %v1029
    %v1031 = vrot.slane %v280, %v1030
    %v1032 = vsel %vm1027, %v1031, 0.0
    %vm1033 = vcmp.eq.s32.totalorder %v1026, 1
    %v1034 = vlaneseq
    %v1035 = vshrl.u32 %v1034, 7
    %v1036 = vsub.s32 2, %v1035
    %v1037 = vrot.slane %v386, %v1036
    %v1038 = vsel %vm1033, %v1037, %v1032
    %vm1039 = vcmp.eq.s32.totalorder %v1026, 2
    %v1040 = vlaneseq
    %v1041 = vshrl.u32 %v1040, 7
    %v1042 = vsub.s32 4, %v1041
    %v1043 = vrot.slane %v493, %v1042
    %v1044 = vsel %vm1039, %v1043, %v1038
    %vm1045 = vcmp.eq.s32.totalorder %v1026, 3
    %v1046 = vlaneseq
    %v1047 = vshrl.u32 %v1046, 7
    %v1048 = vsub.s32 6, %v1047
    %v1049 = vrot.slane %v600, %v1048
    %v1050 = vsel %vm1045, %v1049, %v1044
    %vm1051 = vcmp.eq.s32.totalorder %v1026, 4
    %v1052 = vlaneseq
    %v1053 = vshrl.u32 %v1052, 7
    %v1054 = vsub.s32 0, %v1053
    %v1055 = vrot.slane %v704, %v1054
    %v1056 = vsel %vm1051, %v1055, %v1050
    %vm1057 = vcmp.eq.s32.totalorder %v1026, 5
    %v1058 = vlaneseq
    %v1059 = vshrl.u32 %v1058, 7
    %v1060 = vsub.s32 2, %v1059
    %v1061 = vrot.slane %v810, %v1060
    %v1062 = vsel %vm1057, %v1061, %v1056
    %vm1063 = vcmp.eq.s32.totalorder %v1026, 6
    %v1064 = vlaneseq
    %v1065 = vshrl.u32 %v1064, 7
    %v1066 = vsub.s32 4, %v1065
    %v1067 = vrot.slane %v917, %v1066
    %v1068 = vsel %vm1063, %v1067, %v1062
    %vm1069 = vcmp.eq.s32.totalorder %v1026, 7
    %v1070 = vlaneseq
    %v1071 = vshrl.u32 %v1070, 7
    %v1072 = vsub.s32 6, %v1071
    %v1073 = vrot.slane %v1024, %v1072
    %v1074 = vsel %vm1069, %v1073, %v1068
    %v1076 = vlaneseq
    %v1077 = vshrl.u32 %v1076, 7
    %v1078 = vsub.s32 0, %v1077
    %v1079 = vrot.slane %v87, %v1078
    %1082 = vrot.lane.b32.xlu0 %v1074, 32
    %v1083 = vpop.permute.xlu0 %1082
    %v1084 = vsel %vm101, %v1083, 0
    %1086 = vmatprep.subr.mxu0 0.0
    %1087 = vmatpush1.msra.mxu0 0.0
    %1088 = vmatprep.subr.mxu0 0.0
    %1089 = vmatpush1.msra.mxu0 0.0
    %1090 = vmatprep.subr.mxu0 0.0
    %1091 = vmatpush1.msra.mxu0 0.0
    %1092 = vmatprep.subr.mxu0 0.0
    %1093 = vmatpush1.msra.mxu0 0.0
    %1094 = vmatprep.subr.mxu0 0.0
    %1095 = vmatpush1.msra.mxu0 0.0
    %1096 = vmatprep.subr.mxu0 0.0
    %1097 = vmatpush1.msra.mxu0 0.0
    %1098 = vmatprep.subr.mxu0 0.0
    %1099 = vmatpush1.msra.mxu0 0.0
    %1100 = vmatprep.subr.mxu0 0.0
    %1101 = vmatpush1.msra.mxu0 0.0
    %1102 = vmatprep.subr.mxu0 0.0
    %1103 = vmatpush1.msra.mxu0 0.0
    %1104 = vmatprep.subr.mxu0 0.0
    %1105 = vmatpush1.msra.mxu0 0.0
    %1106 = vmatprep.subr.mxu0 0.0
    %1107 = vmatpush1.msra.mxu0 0.0
    %1108 = vmatprep.subr.mxu0 0.0
    %1109 = vmatpush1.msra.mxu0 0.0
    %1110 = vmatprep.subr.mxu0 0.0
    %1111 = vmatpush1.msra.mxu0 %v86
    %1112 = vmatprep.subr.mxu0 0.0
    %1113 = vmatpush1.msra.mxu0 %v85
    %1114 = vmatprep.subr.mxu0 0.0
    %1115 = vmatpush1.msra.mxu0 %v84
    %1116 = vmatprep.subr.mxu0 0.0
    %1117 = vmatpush1.msra.mxu0 %v83
    %1118 = vmatprep.subr.mxu0 0.0
    %1119 = vmatpush2.msra.mxu0 0.0
    %1120 = vmatprep.subr.mxu0 0.0
    %1121 = vmatpush2.msra.mxu0 0.0
    %1122 = vmatprep.subr.mxu0 0.0
    %1123 = vmatpush2.msra.mxu0 0.0
    %1124 = vmatprep.subr.mxu0 0.0
    %1125 = vmatpush2.msra.mxu0 0.0
    %1126 = vmatprep.subr.mxu0 0.0
    %1127 = vmatpush2.msra.mxu0 0.0
    %1128 = vmatprep.subr.mxu0 0.0
    %1129 = vmatpush2.msra.mxu0 0.0
    %1130 = vmatprep.subr.mxu0 0.0
    %1131 = vmatpush2.msra.mxu0 0.0
    %1132 = vmatprep.subr.mxu0 0.0
    %1133 = vmatpush2.msra.mxu0 0.0
    %1134 = vmatprep.subr.mxu0 0.0
    %1135 = vmatpush2.msra.mxu0 0.0
    %1136 = vmatprep.subr.mxu0 0.0
    %1137 = vmatpush2.msra.mxu0 0.0
    %1138 = vmatprep.subr.mxu0 0.0
    %1139 = vmatpush2.msra.mxu0 0.0
    %1140 = vmatprep.subr.mxu0 0.0
    %1141 = vmatpush2.msra.mxu0 0.0
    %1142 = vmatprep.subr.mxu0 0.0
    %1143 = vmatpush2.msra.mxu0 0.0
    %1144 = vmatprep.subr.mxu0 0.0
    %1145 = vmatpush2.msra.mxu0 0.0
    %1146 = vmatprep.subr.mxu0 0.0
    %1147 = vmatpush2.msra.mxu0 0.0
    %1148 = vmatprep.subr.mxu0 0.0
    %1149 = vmatpush2.msra.mxu0 0.0
    %1150 = vmatprep.mubr.f32.mxu0 0.0
    %1151 = vmatmul.mubr.f32.gmra.mxu0 %v1084
    %v1152 = vpop.f32.mrf.mxu0
    %v1153 = vadd.f32 %v1079, %v1152
    %v1154 = vpop.f32.mrf.mxu0
    %1155 = vdwg.mxu0
    %vm1156 = vcmask 441344
    %v1157 = vsel %vm1156, %v1153, -inf
    %v1158 = vrot.slane %v1157, 4
    %v1159 = vmax.f32 %v1157, %v1158
    %v1160 = vrot.slane %v1159, 2
    %v1161 = vmax.f32 %v1159, %v1160
    %v1162 = vrot.slane %v1161, 1
    %v1163 = vmax.f32 %v1161, %v1162
    %v1164 = vsub.f32 %v1153, %v1163
    %v1165 = vmul.f32 %v1164, 1.442695
    %v1166 = vpow.pop %v1165
    %v1167 = vsel %vm1156, %v1166, 0.0
    %v1168 = vrot.slane %v1167, 4
    %v1169 = vadd.f32 %v1167, %v1168
    %v1170 = vrot.slane %v1169, 2
    %v1171 = vadd.f32 %v1169, %v1170
    %v1172 = vrot.slane %v1171, 1
    %v1173 = vadd.f32 %v1171, %v1172
    %v1174 = vrcp.pop %v1173
    %v1175 = vmul.f32 %v1166, %v1174
    %1176 = vst.msk [vmem:[#allocation10] sm:$0xff] %vm1156, %v1175
    %v1177 = vlaneseq
    %v1178 = vshrl.u32 %v1177, 7
    %v1179 = vsub.s32 1, %v1178
    %v1180 = vrot.slane %v280, %v1179
    %v1181 = vsel %vm1027, %v1180, 0.0
    %v1182 = vlaneseq
    %v1183 = vshrl.u32 %v1182, 7
    %v1184 = vsub.s32 3, %v1183
    %v1185 = vrot.slane %v386, %v1184
    %v1186 = vsel %vm1033, %v1185, %v1181
    %v1187 = vlaneseq
    %v1188 = vshrl.u32 %v1187, 7
    %v1189 = vsub.s32 5, %v1188
    %v1190 = vrot.slane %v493, %v1189
    %v1191 = vsel %vm1039, %v1190, %v1186
    %v1192 = vlaneseq
    %v1193 = vshrl.u32 %v1192, 7
    %v1194 = vsub.s32 7, %v1193
    %v1195 = vrot.slane %v600, %v1194
    %v1196 = vsel %vm1045, %v1195, %v1191
    %v1197 = vlaneseq
    %v1198 = vshrl.u32 %v1197, 7
    %v1199 = vsub.s32 1, %v1198
    %v1200 = vrot.slane %v704, %v1199
    %v1201 = vsel %vm1051, %v1200, %v1196
    %v1202 = vlaneseq
    %v1203 = vshrl.u32 %v1202, 7
    %v1204 = vsub.s32 3, %v1203
    %v1205 = vrot.slane %v810, %v1204
    %v1206 = vsel %vm1057, %v1205, %v1201
    %v1207 = vlaneseq
    %v1208 = vshrl.u32 %v1207, 7
    %v1209 = vsub.s32 5, %v1208
    %v1210 = vrot.slane %v917, %v1209
    %v1211 = vsel %vm1063, %v1210, %v1206
    %v1212 = vlaneseq
    %v1213 = vshrl.u32 %v1212, 7
    %v1214 = vsub.s32 7, %v1213
    %v1215 = vrot.slane %v1024, %v1214
    %v1216 = vsel %vm1069, %v1215, %v1211
    %1218 = vrot.lane.b32.xlu0 %v1216, 32
    %v1219 = vpop.permute.xlu0 %1218
    %v1220 = vsel %vm101, %v1219, 0
    %1222 = vmatprep.subr.mxu0 0.0
    %1223 = vmatpush1.msra.mxu0 0.0
    %1224 = vmatprep.subr.mxu0 0.0
    %1225 = vmatpush1.msra.mxu0 0.0
    %1226 = vmatprep.subr.mxu0 0.0
    %1227 = vmatpush1.msra.mxu0 0.0
    %1228 = vmatprep.subr.mxu0 0.0
    %1229 = vmatpush1.msra.mxu0 0.0
    %1230 = vmatprep.subr.mxu0 0.0
    %1231 = vmatpush1.msra.mxu0 0.0
    %1232 = vmatprep.subr.mxu0 0.0
    %1233 = vmatpush1.msra.mxu0 0.0
    %1234 = vmatprep.subr.mxu0 0.0
    %1235 = vmatpush1.msra.mxu0 0.0
    %1236 = vmatprep.subr.mxu0 0.0
    %1237 = vmatpush1.msra.mxu0 0.0
    %1238 = vmatprep.subr.mxu0 0.0
    %1239 = vmatpush1.msra.mxu0 0.0
    %1240 = vmatprep.subr.mxu0 0.0
    %1241 = vmatpush1.msra.mxu0 0.0
    %1242 = vmatprep.subr.mxu0 0.0
    %1243 = vmatpush1.msra.mxu0 0.0
    %1244 = vmatprep.subr.mxu0 0.0
    %1245 = vmatpush1.msra.mxu0 0.0
    %1246 = vmatprep.subr.mxu0 0.0
    %1247 = vmatpush1.msra.mxu0 %v86
    %1248 = vmatprep.subr.mxu0 0.0
    %1249 = vmatpush1.msra.mxu0 %v85
    %1250 = vmatprep.subr.mxu0 0.0
    %1251 = vmatpush1.msra.mxu0 %v84
    %1252 = vmatprep.subr.mxu0 0.0
    %1253 = vmatpush1.msra.mxu0 %v83
    %1254 = vmatprep.subr.mxu0 0.0
    %1255 = vmatpush2.msra.mxu0 0.0
    %1256 = vmatprep.subr.mxu0 0.0
    %1257 = vmatpush2.msra.mxu0 0.0
    %1258 = vmatprep.subr.mxu0 0.0
    %1259 = vmatpush2.msra.mxu0 0.0
    %1260 = vmatprep.subr.mxu0 0.0
    %1261 = vmatpush2.msra.mxu0 0.0
    %1262 = vmatprep.subr.mxu0 0.0
    %1263 = vmatpush2.msra.mxu0 0.0
    %1264 = vmatprep.subr.mxu0 0.0
    %1265 = vmatpush2.msra.mxu0 0.0
    %1266 = vmatprep.subr.mxu0 0.0
    %1267 = vmatpush2.msra.mxu0 0.0
    %1268 = vmatprep.subr.mxu0 0.0
    %1269 = vmatpush2.msra.mxu0 0.0
    %1270 = vmatprep.subr.mxu0 0.0
    %1271 = vmatpush2.msra.mxu0 0.0
    %1272 = vmatprep.subr.mxu0 0.0
    %1273 = vmatpush2.msra.mxu0 0.0
    %1274 = vmatprep.subr.mxu0 0.0
    %1275 = vmatpush2.msra.mxu0 0.0
    %1276 = vmatprep.subr.mxu0 0.0
    %1277 = vmatpush2.msra.mxu0 0.0
    %1278 = vmatprep.subr.mxu0 0.0
    %1279 = vmatpush2.msra.mxu0 0.0
    %1280 = vmatprep.subr.mxu0 0.0
    %1281 = vmatpush2.msra.mxu0 0.0
    %1282 = vmatprep.subr.mxu0 0.0
    %1283 = vmatpush2.msra.mxu0 0.0
    %1284 = vmatprep.subr.mxu0 0.0
    %1285 = vmatpush2.msra.mxu0 0.0
    %1286 = vmatprep.mubr.f32.mxu0 0.0
    %1287 = vmatmul.mubr.f32.gmra.mxu0 %v1220
    %v1288 = vpop.f32.mrf.mxu0
    %v1289 = vadd.f32 %v1079, %v1288
    %v1290 = vpop.f32.mrf.mxu0
    %1291 = vdwg.mxu0
    %v1292 = vsel %vm1156, %v1289, -inf
    %v1293 = vrot.slane %v1292, 4
    %v1294 = vmax.f32 %v1292, %v1293
    %v1295 = vrot.slane %v1294, 2
    %v1296 = vmax.f32 %v1294, %v1295
    %v1297 = vrot.slane %v1296, 1
    %v1298 = vmax.f32 %v1296, %v1297
    %v1299 = vsub.f32 %v1289, %v1298
    %v1300 = vmul.f32 %v1299, 1.442695
    %v1301 = vpow.pop %v1300
    %v1302 = vsel %vm1156, %v1301, 0.0
    %v1303 = vrot.slane %v1302, 4
    %v1304 = vadd.f32 %v1302, %v1303
    %v1305 = vrot.slane %v1304, 2
    %v1306 = vadd.f32 %v1304, %v1305
    %v1307 = vrot.slane %v1306, 1
    %v1308 = vadd.f32 %v1306, %v1307
    %v1309 = vrcp.pop %v1308
    %v1310 = vmul.f32 %v1301, %v1309
    %s1311 = scalar_lea.vmem [#allocation10], 8
    %1312 = vst.msk [vmem:[%s1311] sm:$0xff] %vm1156, %v1310
    // Predicated region
    $region42: #{tpu_custom_call.1} parent=1 // pred_check
      _
    $region43: #{tpu_custom_call.1} parent=1 // pred_check_branch
      %1314 = sbr.rel (0) target = $region45
    $region44: #{tpu_custom_call.1} parent=1 // pred_region
      %s1316 = ssub.s32 256, 256
      %1317 = vsyncadd [#allocation4], %s1316
      %s1318 = sshll.u32 [#allocation10], 4
      %s1319 = int_to_ptr.vmem [resolvable:$true] %s1318
      %1324 = dma.vmem_to_hbm [thread:$0]  %s1319, 256, %s6, [#allocation4], 128, 128, 8
    $region45: #{tpu_custom_call.1} parent=1 // pred_fallthru
      _
    // Predicated region
    $region46: #{tpu_custom_call.1} parent=1 // pred_check
      _
    $region47: #{tpu_custom_call.1} parent=1 // pred_check_branch
      %1326 = sbr.rel (0) target = $region49
    $region48: #{tpu_custom_call.1} parent=1 // pred_region
      %1327 = dma.done [#allocation4], 256
    $region49: #{tpu_custom_call.1} parent=1 // pred_fallthru
      _
    %1328 = vsyncpa [#allocation3], 1
    %1329 = vsyncpa [#allocation6], 1
    %1330 = vsyncpa [#allocation9], 1
    %1331 = vsyncpa [#allocation4], 1

</llo_original>
